<compile_context>
chip_gen: v7x
topology: tpu7x:2x2x1
jax: 0.10.0
libtpu: 0.0.40
codegen_flags: <defaults>
</compile_context>

<pallas_src>
import functools

import jax
import jax.numpy as jnp
from jax import lax
from jax.experimental import pallas as pl
from jax.experimental.pallas import tpu as pltpu


def _round_up(v, m):
    return (v + m - 1) // m * m


def _hw_params():
    """Best-effort hardware introspection; every probe has a safe fallback."""
    kind = ""
    try:
        kind = jax.devices()[0].device_kind.lower()
    except Exception:
        pass
    # v5e and older: 128-wide MXU, no bf16 VPU/EUP.
    narrow_chip = any(t in kind for t in ("v2", "v3", "v4", "v5"))
    vmem_cap = (64 if "v7" in kind else 128) * 1024 * 1024
    try:
        vmem_cap = int(pltpu.get_tpu_info().vmem_capacity_bytes)
    except Exception:
        pass
    return vmem_cap, narrow_chip


# ----------------------------------------------------------------------------
# Pallas kernel: implicit-im2col conv (single fused matmul) + BN affine + act.
# ----------------------------------------------------------------------------
def _conv_bn_act_kernel(x_ref, w_ref, shift_ref, o_ref, *,
                        n_kh, row_pitch, lpad, chunk_m, activation,
                        fuse_kh, low_precision_act):
    # x_ref:     (1, Hp*P, KW*Cin)  bf16  column-shifted, pitch-padded image
    # w_ref:     (KH*KW*Cin, tile_n) bf16 if fuse_kh else (KH, KW*Cin, tile_n)
    # shift_ref: (1, tile_n)         f32  conv bias + BN shift
    # o_ref:     (1, Lpad, tile_n)   out dtype; Lpad = OH1 * P
    shift = shift_ref[...]                                    # hoisted broadcast
    if fuse_kh:
        w_parts = (w_ref[...],)                               # (K, tile_n)
    else:
        w_parts = tuple(w_ref[i] for i in range(n_kh))        # KH x (KW*Cin, tile_n)

    def _act(y):
        if activation == "relu":
            return jnp.maximum(y, 0.0)
        if activation == "leakyrelu":
            return jnp.where(y >= 0.0, y, 0.01 * y)           # PyTorch default slope
        if activation == "tanh":
            return jnp.tanh(y)
        if activation == "sigmoid":
            return jax.nn.sigmoid(y)
        return y

    # Static M tiling: bounded live f32 state per chunk (no full-slab spills).
    for start in range(0, lpad, chunk_m):
        m = min(chunk_m, lpad - start)
        # KH row shifts = sublane slices of the VMEM-resident image block;
        # row_pitch and chunk_m are multiples of 16 -> aligned for packed bf16.
        views = [x_ref[0, pl.ds(start + i * row_pitch, m), :]
                 for i in range(n_kh)]
        if fuse_kh:
            patch = views[0] if n_kh == 1 else jnp.concatenate(views, axis=-1)
            acc = jnp.dot(patch, w_parts[0], preferred_element_type=jnp.float32)
        else:
            acc = jnp.dot(views[0], w_parts[0], preferred_element_type=jnp.float32)
            for i in range(1, n_kh):
                acc += jnp.dot(views[i], w_parts[i],
                               preferred_element_type=jnp.float32)
        y = acc + shift                                       # single f32 VPU add
        if low_precision_act:
            y = y.astype(o_ref.dtype)                         # bf16 act on v6e/v7x
        y = _act(y)
        o_ref[0, pl.ds(start, m), :] = y.astype(o_ref.dtype)


# ----------------------------------------------------------------------------
# Wrapper: layout plumbing + pallas_call.
# ----------------------------------------------------------------------------
def conv_layer_forward(x, params, *, stride=1, padding=0, batch_norm=True,
                       activation=None, compute_dtype=jnp.bfloat16,
                       out_dtype=jnp.bfloat16):
    """Equivalent of ConvLayer.forward.  x: (B, Cin, H, W) float32 (NCHW).

    Returns NCHW output in `out_dtype` (bf16 by default to halve the output
    HBM stream; pass jnp.float32 for a full-precision result)."""
    w = params["conv_w"]                       # (Cout, Cin, KH, KW)
    b_conv = params["conv_b"]                  # (Cout,)
    cout, cin, ksh, ksw = w.shape
    bsz, _, h, wdt = x.shape

    hp, wp = h + 2 * padding, wdt + 2 * padding
    oh1, ow1 = hp - ksh + 1, wp - ksw + 1      # stride-1 "valid" output extent
    assert oh1 >= 1 and ow1 >= 1, "kernel larger than padded input"
    oh = (hp - ksh) // stride + 1
    ow = (wp - ksw) // stride + 1

    # ---- fold conv bias + BatchNorm (inference) into per-channel scale/shift
    if batch_norm:
        gamma, beta = params["bn_gamma"], params["bn_beta"]
        rmean, rvar = params["bn_mean"], params["bn_var"]
        eps = 1e-5
        scale = gamma / jnp.sqrt(rvar + eps)                  # (Cout,)
        shift = beta + (b_conv - rmean) * scale               # (Cout,)
    else:
        scale = jnp.ones((cout,), jnp.float32)
        shift = b_conv

    # ---- generation-aware tiling knobs
    vmem_cap, narrow_chip = _hw_params()
    tile_n = 256 if (not narrow_chip and _round_up(cout, 128) % 256 == 0) else 128
    cout_pad = _round_up(cout, tile_n)

    # ---- weights -> (KH*KW*Cin, Cout_pad), BN scale folded in, bf16
    kcols = ksw * cin
    K = ksh * kcols
    w_r = jnp.transpose(w, (2, 3, 1, 0)).reshape(K, cout) * scale[None, :]
    w_r = jnp.pad(w_r, ((0, 0), (0, cout_pad - cout))).astype(compute_dtype)
    shift_row = jnp.pad(shift, (0, cout_pad - cout)).reshape(1, cout_pad)
    shift_row = shift_row.astype(jnp.float32)

    # ---- KW column-shifted, pitch-padded input (bf16), built in few passes:
    # one NHWC transpose, pad (already bf16), lane-concat of KW slices.
    # P = row pitch = round_up(OW1, 16): >= valid output columns, sublane
    # aligned for packed bf16, without the junk-column waste of round_up(Wp,16).
    P = _round_up(ow1, 16)
    lpad = oh1 * P                                            # flat output rows
    wtot = P + ksw - 1                                        # >= Wp
    x_nhwc = jnp.transpose(x, (0, 2, 3, 1)).astype(compute_dtype)   # (B,H,W,Cin)
    x_p = jnp.pad(x_nhwc, ((0, 0), (padding, padding),
                           (padding, wtot - wdt - padding), (0, 0)))
    xsh = jnp.concatenate([x_p[:, :, j:j + P, :] for j in range(ksw)], axis=-1)
    xsh = xsh.reshape(bsz, hp * P, kcols)                     # (B, Hp*P, KW*Cin)

    # ---- in-kernel M chunking (~256 flat rows, kept a multiple of the pitch)
    chunk_m = min(lpad, max(1, 256 // P) * P)

    # ---- VMEM budget -> vmem_limit_bytes (respects v7x's 64 MiB per core)
    isz = jnp.dtype(compute_dtype).itemsize
    osz = jnp.dtype(out_dtype).itemsize
    est = (2 * hp * P * _round_up(kcols, 128) * isz           # x block (dbl-buf)
           + 2 * _round_up(K, 16) * tile_n * isz              # weight block
           + 2 * 8 * tile_n * 4                               # shift block
           + 2 * lpad * tile_n * osz                          # out block (dbl-buf)
           + chunk_m * _round_up(K, 128) * isz                # in-kernel patch
           + 2 * chunk_m * tile_n * 4)                        # dot result / epilogue
    vmem_limit = int(min(max(2 * est, 32 * 1024 * 1024),
                         48 * 1024 * 1024, vmem_cap * 3 // 4))

    low_precision_act = (osz < 4) and (not narrow_chip)       # bf16 VPU only on v6e+

    def _call(fuse_kh):
        if fuse_kh:
            w_arg = w_r                                       # (K, Cout_pad)
            w_spec = pl.BlockSpec((K, tile_n), lambda b, n: (0, n))
        else:
            w_arg = w_r.reshape(ksh, kcols, cout_pad)
            w_spec = pl.BlockSpec((ksh, kcols, tile_n), lambda b, n: (0, 0, n))
        kernel = functools.partial(
            _conv_bn_act_kernel, n_kh=ksh, row_pitch=P, lpad=lpad,
            chunk_m=chunk_m, activation=activation, fuse_kh=fuse_kh,
            low_precision_act=low_precision_act)
        return pl.pallas_call(
            kernel,
            out_shape=jax.ShapeDtypeStruct((bsz, lpad, cout_pad), out_dtype),
            grid_spec=pltpu.PrefetchScalarGridSpec(
                num_scalar_prefetch=0,
                grid=(bsz, cout_pad // tile_n),
                in_specs=[
                    pl.BlockSpec((1, hp * P, kcols), lambda b, n: (b, 0, 0)),
                    w_spec,
                    pl.BlockSpec((1, tile_n), lambda b, n: (0, n)),
                ],
                out_specs=pl.BlockSpec((1, lpad, tile_n),
                                       lambda b, n: (b, 0, n)),
            ),
            compiler_params=pltpu.CompilerParams(
                dimension_semantics=("parallel", "parallel"),
                vmem_limit_bytes=vmem_limit),
        )(xsh, w_arg, shift_row)

    try:
        out = _call(True)       # single K = KH*KW*Cin matmul per M chunk
    except Exception:
        # Mosaic build without unaligned lane concatenation: per-KH-tap dots.
        out = _call(False)

    # ---- un-flatten: (B, OH1*P, Cout_pad) -> (B, Cout, OH, OW) NCHW
    y = out[:, :, :cout].reshape(bsz, oh1, P, cout)[:, :, :ow1, :]
    if stride > 1:
        y = y[:, ::stride, ::stride, :]
    y = y[:, :oh, :ow, :]
    return jnp.transpose(y, (0, 3, 1, 2))


# ----------------------------------------------------------------------------
# Parameter init + pure-JAX reference.
# ----------------------------------------------------------------------------
def init_params(key, in_channels, out_channels, kernel_size):
    k0, k1, k2, k3 = jax.random.split(key, 4)
    fan_in = in_channels * kernel_size * kernel_size
    bound = 1.0 / jnp.sqrt(fan_in)
    return {
        "conv_w": jax.random.uniform(
            k0, (out_channels, in_channels, kernel_size, kernel_size),
            jnp.float32, -bound, bound),
        "conv_b": jax.random.uniform(k1, (out_channels,), jnp.float32,
                                     -bound, bound),
        "bn_gamma": jnp.ones((out_channels,), jnp.float32),
        "bn_beta": jnp.zeros((out_channels,), jnp.float32),
        "bn_mean": 0.1 * jax.random.normal(k2, (out_channels,), jnp.float32),
        "bn_var": 1.0 + 0.1 * jax.random.uniform(k3, (out_channels,),
                                                 jnp.float32),
    }


def _reference(x, params, *, stride, padding, batch_norm, activation):
    y = lax.conv_general_dilated(
        x, params["conv_w"], window_strides=(stride, stride),
        padding=[(padding, padding), (padding, padding)],
        dimension_numbers=("NCHW", "OIHW", "NCHW"))
    y = y + params["conv_b"][None, :, None, None]
    if batch_norm:
        eps = 1e-5
        scale = params["bn_gamma"] / jnp.sqrt(params["bn_var"] + eps)
        y = (y - params["bn_mean"][None, :, None, None]) * \
            scale[None, :, None, None] + params["bn_beta"][None, :, None, None]
    if activation == "relu":
        y = jnp.maximum(y, 0.0)
    elif activation == "leakyrelu":
        y = jnp.where(y >= 0.0, y, 0.01 * y)
    elif activation == "tanh":
        y = jnp.tanh(y)
    elif activation == "sigmoid":
        y = jax.nn.sigmoid(y)
    return y


if __name__ == "__main__":
    key = jax.random.PRNGKey(0)
    k_x, k_p = jax.random.split(key)

    B, Cin, H, W = 2, 4, 16, 16
    Cout, Ksz, stride, padding = 8, 3, 1, 1
    activation = "relu"

    x = jax.random.normal(k_x, (B, Cin, H, W), jnp.float32)
    params = init_params(k_p, Cin, Cout, Ksz)

    y = conv_layer_forward(x, params, stride=stride, padding=padding,
                           batch_norm=True, activation=activation)
    y = jax.block_until_ready(y)

    y_ref = _reference(x, params, stride=stride, padding=padding,
                       batch_norm=True, activation=activation)
    assert y.shape == (B, Cout, H, W), y.shape
    # bf16 operands + bf16 output (f32 accumulation) -> small drift vs f32 ref.
    y_f32 = y.astype(jnp.float32)
    assert jnp.allclose(y_f32, y_ref, rtol=2e-2, atol=2e-2), \
        float(jnp.max(jnp.abs(y_f32 - y_ref)))

    print("KERNEL_OK")
</pallas_src>

<mosaic_0001>
module attributes {stable_mosaic.version = 11 : i64} {
  func.func @_conv_bn_act_kernel(%arg0: i32, %arg1: i32, %arg2: memref<1x288x12xbf16, #tpu.memory_space<vmem>>, %arg3: memref<36x128xbf16, #tpu.memory_space<vmem>>, %arg4: memref<1x128xf32, #tpu.memory_space<vmem>>, %arg5: memref<1x256x128xbf16, #tpu.memory_space<vmem>>) attributes {dimension_semantics = [#tpu.dimension_semantics<parallel>, #tpu.dimension_semantics<parallel>], iteration_bounds = array<i64: 2, 1>, scalar_prefetch = 0 : i64, scratch_operands = 0 : i64, tpu.core_type = #tpu.core_type<tc>, window_params = [{transform_indices = @transform_0, window_bounds = array<i64: 1, 288, 12>}, {transform_indices = @transform_1, window_bounds = array<i64: 36, 128>}, {transform_indices = @transform_2, window_bounds = array<i64: 1, 128>}, {transform_indices = @transform_3, window_bounds = array<i64: 1, 256, 128>}]} {
    %c0 = arith.constant 0 : index
    %c0_0 = arith.constant 0 : index
    %0 = vector.load %arg4[%c0, %c0_0] : memref<1x128xf32, #tpu.memory_space<vmem>>, vector<1x128xf32>
    %c0_1 = arith.constant 0 : index
    %c0_2 = arith.constant 0 : index
    %1 = vector.load %arg3[%c0_1, %c0_2] : memref<36x128xbf16, #tpu.memory_space<vmem>>, vector<36x128xbf16>
    %c0_3 = arith.constant 0 : index
    %c0_4 = arith.constant 0 : index
    %c0_5 = arith.constant 0 : index
    %2 = vector.load %arg2[%c0_3, %c0_4, %c0_5] : memref<1x288x12xbf16, #tpu.memory_space<vmem>>, vector<1x256x12xbf16>
    %3 = vector.shape_cast %2 : vector<1x256x12xbf16> to vector<256x12xbf16>
    %c0_6 = arith.constant 0 : index
    %c16 = arith.constant 16 : index
    %c0_7 = arith.constant 0 : index
    %4 = vector.load %arg2[%c0_6, %c16, %c0_7] : memref<1x288x12xbf16, #tpu.memory_space<vmem>>, vector<1x256x12xbf16>
    %5 = vector.shape_cast %4 : vector<1x256x12xbf16> to vector<256x12xbf16>
    %c0_8 = arith.constant 0 : index
    %c32 = arith.constant 32 : index
    %c0_9 = arith.constant 0 : index
    %6 = vector.load %arg2[%c0_8, %c32, %c0_9] : memref<1x288x12xbf16, #tpu.memory_space<vmem>>, vector<1x256x12xbf16>
    %7 = vector.shape_cast %6 : vector<1x256x12xbf16> to vector<256x12xbf16>
    %8 = tpu.concatenate %3, %5, %7 in 1 : vector<256x12xbf16>, vector<256x12xbf16>, vector<256x12xbf16> -> vector<256x36xbf16>
    %cst = arith.constant dense<0.000000e+00> : vector<256x128xf32>
    %9 = tpu.matmul %8, %1, %cst {dimension_numbers = #tpu.dot_dimension_numbers<[1], [0], [0], [1], [0, 0, 1, 1], [], []>} : vector<256x36xbf16>, vector<36x128xbf16>, vector<256x128xf32> -> vector<256x128xf32>
    %10 = vector.broadcast %0 : vector<1x128xf32> to vector<256x128xf32>
    %11 = arith.addf %9, %10 : vector<256x128xf32>
    %12 = arith.truncf %11 : vector<256x128xf32> to vector<256x128xbf16>
    %cst_10 = arith.constant 0.000000e+00 : bf16
    %13 = vector.broadcast %cst_10 : bf16 to vector<256x128xbf16>
    %14 = arith.maximumf %12, %13 : vector<256x128xbf16>
    %c0_11 = arith.constant 0 : index
    %c0_12 = arith.constant 0 : index
    %c0_13 = arith.constant 0 : index
    %15 = vector.load %arg5[%c0_11, %c0_12, %c0_13] : memref<1x256x128xbf16, #tpu.memory_space<vmem>>, vector<1x256x128xbf16>
    %16 = vector.shape_cast %15 : vector<1x256x128xbf16> to vector<256x128xbf16>
    %17 = vector.shape_cast %14 : vector<256x128xbf16> to vector<1x256x128xbf16>
    tpu.vector_store %arg5[%c0_11, %c0_12, %c0_13], %17 {strides = array<i32>} : memref<1x256x128xbf16, #tpu.memory_space<vmem>>, vector<1x256x128xbf16>,
    return
  }
  func.func @transform_0(%arg0: i32, %arg1: i32) -> (i32, i32, i32) {
    %c0_i32 = arith.constant 0 : i32
    %c0_i32_0 = arith.constant 0 : i32
    %c0_i32_1 = arith.constant 0 : i32
    return %arg0, %c0_i32, %c0_i32_0 : i32, i32, i32
  }
  func.func @transform_1(%arg0: i32, %arg1: i32) -> (i32, i32) {
    %c0_i32 = arith.constant 0 : i32
    %c0_i32_0 = arith.constant 0 : i32
    return %c0_i32, %arg1 : i32, i32
  }
  func.func @transform_2(%arg0: i32, %arg1: i32) -> (i32, i32) {
    %c0_i32 = arith.constant 0 : i32
    %c0_i32_0 = arith.constant 0 : i32
    return %c0_i32, %arg1 : i32, i32
  }
  func.func @transform_3(%arg0: i32, %arg1: i32) -> (i32, i32, i32) {
    %c0_i32 = arith.constant 0 : i32
    %c0_i32_0 = arith.constant 0 : i32
    return %arg0, %c0_i32, %arg1 : i32, i32, i32
  }
}

module attributes {stable_mosaic.version = 11 : i64} {
  func.func @_conv_bn_act_kernel(%arg0: i32, %arg1: i32, %arg2: memref<1x288x12xbf16, #tpu.memory_space<vmem>>, %arg3: memref<3x12x128xbf16, #tpu.memory_space<vmem>>, %arg4: memref<1x128xf32, #tpu.memory_space<vmem>>, %arg5: memref<1x256x128xbf16, #tpu.memory_space<vmem>>) attributes {dimension_semantics = [#tpu.dimension_semantics<parallel>, #tpu.dimension_semantics<parallel>], iteration_bounds = array<i64: 2, 1>, scalar_prefetch = 0 : i64, scratch_operands = 0 : i64, tpu.core_type = #tpu.core_type<tc>, window_params = [{transform_indices = @transform_0, window_bounds = array<i64: 1, 288, 12>}, {transform_indices = @transform_1, window_bounds = array<i64: 3, 12, 128>}, {transform_indices = @transform_2, window_bounds = array<i64: 1, 128>}, {transform_indices = @transform_3, window_bounds = array<i64: 1, 256, 128>}]} {
    %c0 = arith.constant 0 : index
    %c0_0 = arith.constant 0 : index
    %0 = vector.load %arg4[%c0, %c0_0] : memref<1x128xf32, #tpu.memory_space<vmem>>, vector<1x128xf32>
    %c0_1 = arith.constant 0 : index
    %c0_2 = arith.constant 0 : index
    %c0_3 = arith.constant 0 : index
    %1 = vector.load %arg3[%c0_1, %c0_2, %c0_3] : memref<3x12x128xbf16, #tpu.memory_space<vmem>>, vector<1x12x128xbf16>
    %2 = vector.shape_cast %1 : vector<1x12x128xbf16> to vector<12x128xbf16>
    %c1 = arith.constant 1 : index
    %c0_4 = arith.constant 0 : index
    %c0_5 = arith.constant 0 : index
    %3 = vector.load %arg3[%c1, %c0_4, %c0_5] : memref<3x12x128xbf16, #tpu.memory_space<vmem>>, vector<1x12x128xbf16>
    %4 = vector.shape_cast %3 : vector<1x12x128xbf16> to vector<12x128xbf16>
    %c2 = arith.constant 2 : index
    %c0_6 = arith.constant 0 : index
    %c0_7 = arith.constant 0 : index
    %5 = vector.load %arg3[%c2, %c0_6, %c0_7] : memref<3x12x128xbf16, #tpu.memory_space<vmem>>, vector<1x12x128xbf16>
    %6 = vector.shape_cast %5 : vector<1x12x128xbf16> to vector<12x128xbf16>
    %c0_8 = arith.constant 0 : index
    %c0_9 = arith.constant 0 : index
    %c0_10 = arith.constant 0 : index
    %7 = vector.load %arg2[%c0_8, %c0_9, %c0_10] : memref<1x288x12xbf16, #tpu.memory_space<vmem>>, vector<1x256x12xbf16>
    %8 = vector.shape_cast %7 : vector<1x256x12xbf16> to vector<256x12xbf16>
    %c0_11 = arith.constant 0 : index
    %c16 = arith.constant 16 : index
    %c0_12 = arith.constant 0 : index
    %9 = vector.load %arg2[%c0_11, %c16, %c0_12] : memref<1x288x12xbf16, #tpu.memory_space<vmem>>, vector<1x256x12xbf16>
    %10 = vector.shape_cast %9 : vector<1x256x12xbf16> to vector<256x12xbf16>
    %c0_13 = arith.constant 0 : index
    %c32 = arith.constant 32 : index
    %c0_14 = arith.constant 0 : index
    %11 = vector.load %arg2[%c0_13, %c32, %c0_14] : memref<1x288x12xbf16, #tpu.memory_space<vmem>>, vector<1x256x12xbf16>
    %12 = vector.shape_cast %11 : vector<1x256x12xbf16> to vector<256x12xbf16>
    %cst = arith.constant dense<0.000000e+00> : vector<256x128xf32>
    %13 = tpu.matmul %8, %2, %cst {dimension_numbers = #tpu.dot_dimension_numbers<[1], [0], [0], [1], [0, 0, 1, 1], [], []>} : vector<256x12xbf16>, vector<12x128xbf16>, vector<256x128xf32> -> vector<256x128xf32>
    %cst_15 = arith.constant dense<0.000000e+00> : vector<256x128xf32>
    %14 = tpu.matmul %10, %4, %cst_15 {dimension_numbers = #tpu.dot_dimension_numbers<[1], [0], [0], [1], [0, 0, 1, 1], [], []>} : vector<256x12xbf16>, vector<12x128xbf16>, vector<256x128xf32> -> vector<256x128xf32>
    %15 = arith.addf %13, %14 : vector<256x128xf32>
    %cst_16 = arith.constant dense<0.000000e+00> : vector<256x128xf32>
    %16 = tpu.matmul %12, %6, %cst_16 {dimension_numbers = #tpu.dot_dimension_numbers<[1], [0], [0], [1], [0, 0, 1, 1], [], []>} : vector<256x12xbf16>, vector<12x128xbf16>, vector<256x128xf32> -> vector<256x128xf32>
    %17 = arith.addf %15, %16 : vector<256x128xf32>
    %18 = vector.broadcast %0 : vector<1x128xf32> to vector<256x128xf32>
    %19 = arith.addf %17, %18 : vector<256x128xf32>
    %20 = arith.truncf %19 : vector<256x128xf32> to vector<256x128xbf16>
    %cst_17 = arith.constant 0.000000e+00 : bf16
    %21 = vector.broadcast %cst_17 : bf16 to vector<256x128xbf16>
    %22 = arith.maximumf %20, %21 : vector<256x128xbf16>
    %c0_18 = arith.constant 0 : index
    %c0_19 = arith.constant 0 : index
    %c0_20 = arith.constant 0 : index
    %23 = vector.load %arg5[%c0_18, %c0_19, %c0_20] : memref<1x256x128xbf16, #tpu.memory_space<vmem>>, vector<1x256x128xbf16>
    %24 = vector.shape_cast %23 : vector<1x256x128xbf16> to vector<256x128xbf16>
    %25 = vector.shape_cast %22 : vector<256x128xbf16> to vector<1x256x128xbf16>
    tpu.vector_store %arg5[%c0_18, %c0_19, %c0_20], %25 {strides = array<i32>} : memref<1x256x128xbf16, #tpu.memory_space<vmem>>, vector<1x256x128xbf16>,
    return
  }
  func.func @transform_0(%arg0: i32, %arg1: i32) -> (i32, i32, i32) {
    %c0_i32 = arith.constant 0 : i32
    %c0_i32_0 = arith.constant 0 : i32
    %c0_i32_1 = arith.constant 0 : i32
    return %arg0, %c0_i32, %c0_i32_0 : i32, i32, i32
  }
  func.func @transform_1(%arg0: i32, %arg1: i32) -> (i32, i32, i32) {
    %c0_i32 = arith.constant 0 : i32
    %c0_i32_0 = arith.constant 0 : i32
    %c0_i32_1 = arith.constant 0 : i32
    return %c0_i32, %c0_i32_0, %arg1 : i32, i32, i32
  }
  func.func @transform_2(%arg0: i32, %arg1: i32) -> (i32, i32) {
    %c0_i32 = arith.constant 0 : i32
    %c0_i32_0 = arith.constant 0 : i32
    return %c0_i32, %arg1 : i32, i32
  }
  func.func @transform_3(%arg0: i32, %arg1: i32) -> (i32, i32, i32) {
    %c0_i32 = arith.constant 0 : i32
    %c0_i32_0 = arith.constant 0 : i32
    return %arg0, %c0_i32, %arg1 : i32, i32, i32
  }
}

</mosaic_0001>

<llo_original>
// kernel: tpu_custom_call.1
$region0: #{tpu_custom_call.1}
  #allocation0 [shape = 'u32[]', space=smem, size = 0x4, offset = 0x4, fixed_abs, tag = 'smem constant byte address 0x4 - core index']
  #allocation1 [shape = 'u32[144,128]{1,0:T(1,128)}', space=vmem, size = 0x12000, scoped, tag = 'internal scratch']
  %s0 = inlined_call_operand.vmem [shape: bf16[2,288,12], index: 0, kind: input, shape index: {}]
  %s1 = inlined_call_operand.vmem [shape: bf16[36,128], index: 1, kind: input, shape index: {}]
  %s2 = inlined_call_operand.vmem [shape: f32[1,128], index: 2, kind: input, shape index: {}]
  %s3 = inlined_call_operand.hbm [shape: bf16[2,256,128], index: 3, kind: output, shape index: {}]
  %s4 = sld [smem:[#allocation0]]
  $region45: #{tpu_custom_call.1} parent=0
    _
  %s6 = ssub.s32 1, %s4
  %s7 = scalar_select 0, %s6, %s4
  $region1: #{tpu_custom_call.1} parent=0
    #allocation2 [shape = 'u8[131072]{0}', space=vmem, size = 0x20000, scoped, tag = 'output window, operand 0']
    #allocation3 [shape = 's32[2]{0}', space=sflag, size = 0x8, scoped, tag = 'scoped memory for tpu_custom_call.1']
    %8 = vsyncpa [#allocation3], 0
    %s9 = scalar_lea.sflag [#allocation3], 1
    %10 = vsyncpa %s9, 0
    loop: start=0, step=1, limit=4
    $region2: #{tpu_custom_call.1} parent=1 // loop_pre_header
      _
    $region3: #{tpu_custom_call.1} parent=1 // loop_header
      %s12 = sphi 0, %s16
      %p13 = scmp.ge.s32.totalorder %s12, 4
      %s19 = sphi 0, %s31
      %s20 = sphi 0, %s27
      %s21 = sphi 0, %s19
      %s22 = sphi 0, %s20
      %s23 = sphi 0, %s21
      %s24 = sphi 0, %s22
      %s34 = sphi 0, %s36
      %s37 = sphi 0, %s34
      %s38 = sphi 0, %s37
      %s54 = sphi 0, %s38
      %s60 = sphi 0, %s62
      %s63 = sphi 0, %s60
      %s64 = sphi 0, %s63
      %s80 = sphi 0, %s64
      %s86 = sphi 0, %s88
      %s89 = sphi 0, %s86
      %s90 = sphi 0, %s89
      %s106 = sphi 0, %s90
      %s114 = sphi 0, %s116
      %s117 = sphi 0, %s114
      %s118 = sphi 0, %s117
      %s134 = sphi 0, %s118
    $region4: #{tpu_custom_call.1} parent=1 // loop_header_branch
      %15 = sbr.rel (%p13) target = $region8
    $region5: #{tpu_custom_call.1} parent=1 // loop_body
      %s17 = ssub.s32 %s12, 1
      %s18 = ssub.s32 %s12, 2
      %s25 = sadd.s32 1, %s20
      %p26 = scmp.ge.s32.totalorder %s25, 1
      %s27 = scalar_select %p26, 0, %s25
      %s28 = sadd.s32 1, %s19
      %s29 = scalar_select %p26, %s28, %s19
      %p30 = scmp.ge.s32.totalorder %s29, 2
      %s31 = scalar_select %p30, 0, %s29
      %s32 = ssub.s32 %s19, %s31
      %p33 = scmp.eq.s32.totalorder %s32, 0
      %s35 = sadd.s32 %s34, 1
      %s36 = scalar_select %p33, %s34, %s35
      %p39 = pneg %p33
      %p40 = scmp.eq.s32.totalorder %s12, 1
      %p41 = por %p39, %p40
      %p42 = scmp.ne.s32.totalorder %s34, %s37
      %p43 = scmp.eq.s32.totalorder %s12, 0
      %p44 = por %p42, %p43
      %p45 = scmp.ne.s32.totalorder %s34, %s37
      %p46 = scmp.eq.s32.totalorder %s17, 1
      %p47 = por %p45, %p46
      %p48 = scmp.ne.s32.totalorder %s37, %s38
      %p49 = scmp.eq.s32.totalorder %s17, 0
      %p50 = por %p48, %p49
      %p51 = scmp.ne.s32.totalorder %s37, %s38
      %p52 = scmp.eq.s32.totalorder %s18, 1
      %p53 = por %p51, %p52
      %p55 = scmp.ne.s32.totalorder %s38, %s54
      %p56 = scmp.eq.s32.totalorder %s18, 0
      %p57 = por %p55, %p56
      %s58 = ssub.s32 %s20, %s27
      %p59 = scmp.eq.s32.totalorder %s58, 0
      %s61 = sadd.s32 %s60, 1
      %s62 = scalar_select %p59, %s60, %s61
      %p65 = pneg %p59
      %p66 = scmp.eq.s32.totalorder %s12, 1
      %p67 = por %p65, %p66
      %p68 = scmp.ne.s32.totalorder %s60, %s63
      %p69 = scmp.eq.s32.totalorder %s12, 0
      %p70 = por %p68, %p69
      %p71 = scmp.ne.s32.totalorder %s60, %s63
      %p72 = scmp.eq.s32.totalorder %s17, 1
      %p73 = por %p71, %p72
      %p74 = scmp.ne.s32.totalorder %s63, %s64
      %p75 = scmp.eq.s32.totalorder %s17, 0
      %p76 = por %p74, %p75
      %p77 = scmp.ne.s32.totalorder %s63, %s64
      %p78 = scmp.eq.s32.totalorder %s18, 1
      %p79 = por %p77, %p78
      %p81 = scmp.ne.s32.totalorder %s64, %s80
      %p82 = scmp.eq.s32.totalorder %s18, 0
      %p83 = por %p81, %p82
      %s84 = ssub.s32 %s20, %s27
      %p85 = scmp.eq.s32.totalorder %s84, 0
      %s87 = sadd.s32 %s86, 1
      %s88 = scalar_select %p85, %s86, %s87
      %p91 = pneg %p85
      %p92 = scmp.eq.s32.totalorder %s12, 1
      %p93 = por %p91, %p92
      %p94 = scmp.ne.s32.totalorder %s86, %s89
      %p95 = scmp.eq.s32.totalorder %s12, 0
      %p96 = por %p94, %p95
      %p97 = scmp.ne.s32.totalorder %s86, %s89
      %p98 = scmp.eq.s32.totalorder %s17, 1
      %p99 = por %p97, %p98
      %p100 = scmp.ne.s32.totalorder %s89, %s90
      %p101 = scmp.eq.s32.totalorder %s17, 0
      %p102 = por %p100, %p101
      %p103 = scmp.ne.s32.totalorder %s89, %s90
      %p104 = scmp.eq.s32.totalorder %s18, 1
      %p105 = por %p103, %p104
      %p107 = scmp.ne.s32.totalorder %s90, %s106
      %p108 = scmp.eq.s32.totalorder %s18, 0
      %p109 = por %p107, %p108
      %s110 = ssub.s32 %s19, %s31
      %s111 = ssub.s32 %s20, %s27
      %s112 = sor.u32 %s110, %s111
      %p113 = scmp.eq.s32.totalorder %s112, 0
      %s115 = sadd.s32 %s114, 1
      %s116 = scalar_select %p113, %s114, %s115
      %p119 = pneg %p113
      %p120 = scmp.eq.s32.totalorder %s12, 1
      %p121 = por %p119, %p120
      %p122 = scmp.ne.s32.totalorder %s114, %s117
      %p123 = scmp.eq.s32.totalorder %s12, 0
      %p124 = por %p122, %p123
      %p125 = scmp.ne.s32.totalorder %s114, %s117
      %p126 = scmp.eq.s32.totalorder %s17, 1
      %p127 = por %p125, %p126
      %p128 = scmp.ne.s32.totalorder %s117, %s118
      %p129 = scmp.eq.s32.totalorder %s17, 0
      %p130 = por %p128, %p129
      %p131 = scmp.ne.s32.totalorder %s117, %s118
      %p132 = scmp.eq.s32.totalorder %s18, 1
      %p133 = por %p131, %p132
      %p135 = scmp.ne.s32.totalorder %s118, %s134
      %p136 = scmp.eq.s32.totalorder %s18, 0
      %p137 = por %p135, %p136
      %p138 = scmp.le.s32.totalorder 1, %s12
      %p139 = scmp.lt.s32.totalorder %s12, 3
      %p140 = pnand %p138, %p139
      %p141 = pneg %p140
      // Predicated region
      $region9: #{tpu_custom_call.1} parent=5 // pred_check
        _
      $region10: #{tpu_custom_call.1} parent=5 // pred_check_branch
        %143 = sbr.rel (%p140) target = $region12
      $region11: #{tpu_custom_call.1} parent=5 // pred_region
        %s144 = ssub.s32 %s12, 1
        // Predicated region
        $region13: #{tpu_custom_call.1} parent=11 // pred_check
          %p145 = pneg %p76
        $region14: #{tpu_custom_call.1} parent=11 // pred_check_branch
          %147 = sbr.rel (%p145) target = $region16
        $region15: #{tpu_custom_call.1} parent=11 // pred_region
          %p148 = scmp.lt.s32.totalorder %s22, 0
          %s149 = scalar_select %p148, %s22, 0
          %s150 = smul.addr %s149, 4
          %s151 = scalar_lea.vmem %s1, %s150
        $region16: #{tpu_custom_call.1} parent=11 // pred_fallthru
          _
        // Predicated region
        $region17: #{tpu_custom_call.1} parent=11 // pred_check
          %p152 = pneg %p102
        $region18: #{tpu_custom_call.1} parent=11 // pred_check_branch
          %154 = sbr.rel (%p152) target = $region20
        $region19: #{tpu_custom_call.1} parent=11 // pred_region
          %p155 = scmp.lt.s32.totalorder %s22, 0
          %s156 = scalar_select %p155, %s22, 0
          %s157 = scalar_lea.vmem %s2, %s156
        $region20: #{tpu_custom_call.1} parent=11 // pred_fallthru
          _
      $region12: #{tpu_custom_call.1} parent=5 // pred_fallthru
        _
      %p158 = scmp.lt.s32.totalorder %s12, 2
      // Predicated region
      $region21: #{tpu_custom_call.1} parent=5 // pred_check
        %p159 = pneg %p158
      $region22: #{tpu_custom_call.1} parent=5 // pred_check_branch
        %161 = sbr.rel (%p159) target = $region24
      $region23: #{tpu_custom_call.1} parent=5 // pred_region
        // Predicated region
        $region25: #{tpu_custom_call.1} parent=23 // pred_check
          %p162 = pneg %p44
        $region26: #{tpu_custom_call.1} parent=23 // pred_check_branch
          %164 = sbr.rel (%p162) target = $region28
        $region27: #{tpu_custom_call.1} parent=23 // pred_region
          %p165 = scmp.lt.s32.totalorder %s19, 1
          %s166 = scalar_select %p165, %s19, 1
          %s167 = smul.addr %s166, 36
          %s168 = smul.addr %s167, 4
          %s169 = scalar_lea.vmem %s0, %s168
        $region28: #{tpu_custom_call.1} parent=23 // pred_fallthru
          _
      $region24: #{tpu_custom_call.1} parent=5 // pred_fallthru
        _
      %p170 = scmp.le.s32.totalorder 1, %s12
      %p171 = scmp.lt.s32.totalorder %s12, 3
      %p172 = pnand %p170, %p171
      %p173 = pneg %p172
      // Predicated region
      $region29: #{tpu_custom_call.1} parent=5 // pred_check
        _
      $region30: #{tpu_custom_call.1} parent=5 // pred_check_branch
        %175 = sbr.rel (%p172) target = $region32
      $region31: #{tpu_custom_call.1} parent=5 // pred_region
        %s176 = ssub.s32 %s12, 1
        %p177 = scmp.lt.s32.totalorder %s21, 1
        %s178 = scalar_select %p177, %s21, 1
        %s179 = smul.addr %s178, 36
        %s180 = smul.addr %s179, 4
        %s181 = scalar_lea.vmem %s0, %s180
        %p182 = pneg %p50
        %p183 = pneg %p47
        %p184 = scmp.lt.s32.totalorder %s22, 0
        %s185 = scalar_select %p184, %s22, 0
        %s186 = smul.addr %s185, 4
        %s187 = scalar_lea.vmem %s1, %s186
        %p188 = pneg %p76
        %p189 = pneg %p73
        %p190 = scmp.lt.s32.totalorder %s22, 0
        %s191 = scalar_select %p190, %s22, 0
        %s192 = scalar_lea.vmem %s2, %s191
        %p193 = pneg %p102
        %p194 = pneg %p99
        %p195 = pneg %p130
        %p196 = pneg %p127
        %s197 = sand.u32 %s117, 1
        %s198 = scalar_lea.sflag [#allocation3], %s197
        %s199 = sand.u32 %s117, 1
        %s200 = smul.addr %s199, 128
        %s201 = scalar_lea.vmem [#allocation2], %s200
        %p202 = scmp.lt.s32.totalorder %s21, 1
        %s203 = scalar_select %p202, %s21, 1
        %s204 = smul.addr %s203, 36
        %s205 = smul.addr %s204, 4
        %s206 = scalar_lea.vmem %s0, %s205
        %p207 = scmp.lt.s32.totalorder %s22, 0
        %s208 = scalar_select %p207, %s22, 0
        %s209 = smul.addr %s208, 4
        %s210 = scalar_lea.vmem %s1, %s209
        %p211 = scmp.lt.s32.totalorder %s22, 0
        %s212 = scalar_select %p211, %s22, 0
        %s213 = scalar_lea.vmem %s2, %s212
        %v215 = vld [vmem:[%s213] sm:$0x1]
        %v216 = vld [vmem:[%s210] sm:$0xf]
        %v217 = vld [vmem:[%s210 + $0x4] sm:$0xf]
        %v218 = vld [vmem:[%s210 + $0x8] sm:$0xf]
        %v219 = vld [vmem:[%s210 + $0xc] sm:$0xf]
        %v220 = vld [vmem:[%s210 + $0x10] sm:$0x3]
        %v221 = vld [vmem:[%s206] sm:$0xf]
        %v222 = vld [vmem:[%s206 + $0x4] sm:$0xf]
        %v223 = vld [vmem:[%s206 + $0x8] sm:$0xf]
        %v224 = vld [vmem:[%s206 + $0xc] sm:$0xf]
        %v225 = vld [vmem:[%s206 + $0x10] sm:$0xf]
        %v226 = vld [vmem:[%s206 + $0x14] sm:$0xf]
        %v227 = vld [vmem:[%s206 + $0x18] sm:$0xf]
        %v228 = vld [vmem:[%s206 + $0x1c] sm:$0xf]
        %v229 = vld [vmem:[%s206 + $0x20] sm:$0xf]
        %v230 = vld [vmem:[%s206 + $0x24] sm:$0xf]
        %v231 = vld [vmem:[%s206 + $0x28] sm:$0xf]
        %v232 = vld [vmem:[%s206 + $0x2c] sm:$0xf]
        %v233 = vld [vmem:[%s206 + $0x30] sm:$0xf]
        %v234 = vld [vmem:[%s206 + $0x34] sm:$0xf]
        %v235 = vld [vmem:[%s206 + $0x38] sm:$0xf]
        %v236 = vld [vmem:[%s206 + $0x3c] sm:$0xf]
        %v237 = vld [vmem:[%s206 + $0x40] sm:$0xf]
        %v238 = vld [vmem:[%s206 + $0x44] sm:$0xf]
        %v239 = vld [vmem:[%s206 + $0x48] sm:$0xf]
        %v240 = vld [vmem:[%s206 + $0x4c] sm:$0xf]
        %v241 = vld [vmem:[%s206 + $0x50] sm:$0xf]
        %v242 = vld [vmem:[%s206 + $0x54] sm:$0xf]
        %v243 = vld [vmem:[%s206 + $0x58] sm:$0xf]
        %v244 = vld [vmem:[%s206 + $0x5c] sm:$0xf]
        %v245 = vld [vmem:[%s206 + $0x60] sm:$0xf]
        %v246 = vld [vmem:[%s206 + $0x64] sm:$0xf]
        %v247 = vld [vmem:[%s206 + $0x68] sm:$0xf]
        %v248 = vld [vmem:[%s206 + $0x6c] sm:$0xf]
        %v249 = vld [vmem:[%s206 + $0x70] sm:$0xf]
        %v250 = vld [vmem:[%s206 + $0x74] sm:$0xf]
        %v251 = vld [vmem:[%s206 + $0x78] sm:$0xf]
        %v252 = vld [vmem:[%s206 + $0x7c] sm:$0xf]
        %v253 = vld [vmem:[%s206 + $0x80] sm:$0xf]
        %v254 = vld [vmem:[%s206 + $0x84] sm:$0xf]
        %v255 = vld [vmem:[%s206 + $0x88] sm:$0xf]
        %v256 = vld [vmem:[%s206 + $0x8c] sm:$0xf]
        %v289 = vunpack.c.l.b16 %v221
        %v290 = vunpack.c.l.b16 %v222
        %v291 = vunpack.c.l.b16 %v223
        %v292 = vunpack.c.l.b16 %v224
        %v293 = vunpack.c.l.b16 %v225
        %v294 = vunpack.c.l.b16 %v226
        %v295 = vunpack.c.l.b16 %v227
        %v296 = vunpack.c.l.b16 %v228
        %v297 = vunpack.c.l.b16 %v229
        %v298 = vunpack.c.l.b16 %v230
        %v299 = vunpack.c.l.b16 %v231
        %v300 = vunpack.c.l.b16 %v232
        %v301 = vunpack.c.l.b16 %v233
        %v302 = vunpack.c.l.b16 %v234
        %v303 = vunpack.c.l.b16 %v235
        %v304 = vunpack.c.l.b16 %v236
        %v305 = vunpack.c.l.b16 %v237
        %v306 = vunpack.c.l.b16 %v238
        %v307 = vunpack.c.l.b16 %v239
        %v308 = vunpack.c.l.b16 %v240
        %v309 = vunpack.c.l.b16 %v241
        %v310 = vunpack.c.l.b16 %v242
        %v311 = vunpack.c.l.b16 %v243
        %v312 = vunpack.c.l.b16 %v244
        %v313 = vunpack.c.l.b16 %v245
        %v314 = vunpack.c.l.b16 %v246
        %v315 = vunpack.c.l.b16 %v247
        %v316 = vunpack.c.l.b16 %v248
        %v317 = vunpack.c.l.b16 %v249
        %v318 = vunpack.c.l.b16 %v250
        %v319 = vunpack.c.l.b16 %v251
        %v320 = vunpack.c.l.b16 %v252
        %v321 = vpack.c.b16 %v290, %v289
        %v322 = vpack.c.b16 %v292, %v291
        %v323 = vpack.c.b16 %v294, %v293
        %v324 = vpack.c.b16 %v296, %v295
        %v325 = vpack.c.b16 %v298, %v297
        %v326 = vpack.c.b16 %v300, %v299
        %v327 = vpack.c.b16 %v302, %v301
        %v328 = vpack.c.b16 %v304, %v303
        %v329 = vpack.c.b16 %v306, %v305
        %v330 = vpack.c.b16 %v308, %v307
        %v331 = vpack.c.b16 %v310, %v309
        %v332 = vpack.c.b16 %v312, %v311
        %v333 = vpack.c.b16 %v314, %v313
        %v334 = vpack.c.b16 %v316, %v315
        %v335 = vpack.c.b16 %v318, %v317
        %v336 = vpack.c.b16 %v320, %v319
        %v339 = vunpack.c.l.b16 %v253
        %v340 = vunpack.c.l.b16 %v254
        %v341 = vpack.c.b16 %v340, %v339
        %342 = vrot.lane.b32.xlu0 %v322, 12
        %v343 = vpop.permute.xlu0 %342
        %344 = vrot.lane.b32.xlu0 %v323, 12
        %v345 = vpop.permute.xlu0 %344
        %346 = vrot.lane.b32.xlu0 %v324, 12
        %v347 = vpop.permute.xlu0 %346
        %348 = vrot.lane.b32.xlu0 %v325, 12
        %v349 = vpop.permute.xlu0 %348
        %350 = vrot.lane.b32.xlu0 %v326, 12
        %v351 = vpop.permute.xlu0 %350
        %352 = vrot.lane.b32.xlu0 %v327, 12
        %v353 = vpop.permute.xlu0 %352
        %354 = vrot.lane.b32.xlu0 %v328, 12
        %v355 = vpop.permute.xlu0 %354
        %356 = vrot.lane.b32.xlu0 %v329, 12
        %v357 = vpop.permute.xlu0 %356
        %358 = vrot.lane.b32.xlu0 %v330, 12
        %v359 = vpop.permute.xlu0 %358
        %360 = vrot.lane.b32.xlu0 %v331, 12
        %v361 = vpop.permute.xlu0 %360
        %362 = vrot.lane.b32.xlu0 %v332, 12
        %v363 = vpop.permute.xlu0 %362
        %364 = vrot.lane.b32.xlu0 %v333, 12
        %v365 = vpop.permute.xlu0 %364
        %366 = vrot.lane.b32.xlu0 %v334, 12
        %v367 = vpop.permute.xlu0 %366
        %368 = vrot.lane.b32.xlu0 %v335, 12
        %v369 = vpop.permute.xlu0 %368
        %370 = vrot.lane.b32.xlu0 %v336, 12
        %v371 = vpop.permute.xlu0 %370
        %372 = vrot.lane.b32.xlu0 %v341, 12
        %v373 = vpop.permute.xlu0 %372
        %v376 = vunpack.c.l.b16 %v255
        %v377 = vunpack.c.l.b16 %v256
        %v378 = vpack.c.b16 %v377, %v376
        %379 = vrot.lane.b32.xlu0 %v323, 24
        %v380 = vpop.permute.xlu0 %379
        %381 = vrot.lane.b32.xlu0 %v324, 24
        %v382 = vpop.permute.xlu0 %381
        %383 = vrot.lane.b32.xlu0 %v325, 24
        %v384 = vpop.permute.xlu0 %383
        %385 = vrot.lane.b32.xlu0 %v326, 24
        %v386 = vpop.permute.xlu0 %385
        %387 = vrot.lane.b32.xlu0 %v327, 24
        %v388 = vpop.permute.xlu0 %387
        %389 = vrot.lane.b32.xlu0 %v328, 24
        %v390 = vpop.permute.xlu0 %389
        %391 = vrot.lane.b32.xlu0 %v329, 24
        %v392 = vpop.permute.xlu0 %391
        %393 = vrot.lane.b32.xlu0 %v330, 24
        %v394 = vpop.permute.xlu0 %393
        %395 = vrot.lane.b32.xlu0 %v331, 24
        %v396 = vpop.permute.xlu0 %395
        %397 = vrot.lane.b32.xlu0 %v332, 24
        %v398 = vpop.permute.xlu0 %397
        %399 = vrot.lane.b32.xlu0 %v333, 24
        %v400 = vpop.permute.xlu0 %399
        %401 = vrot.lane.b32.xlu0 %v334, 24
        %v402 = vpop.permute.xlu0 %401
        %403 = vrot.lane.b32.xlu0 %v335, 24
        %v404 = vpop.permute.xlu0 %403
        %405 = vrot.lane.b32.xlu0 %v336, 24
        %v406 = vpop.permute.xlu0 %405
        %407 = vrot.lane.b32.xlu0 %v341, 24
        %v408 = vpop.permute.xlu0 %407
        %409 = vrot.lane.b32.xlu0 %v378, 24
        %v410 = vpop.permute.xlu0 %409
        %vm411 = vcmask 97280
        %v414 = vsel %vm411, %v321, %v343
        %v417 = vsel %vm411, %v322, %v345
        %v420 = vsel %vm411, %v323, %v347
        %v423 = vsel %vm411, %v324, %v349
        %v426 = vsel %vm411, %v325, %v351
        %v429 = vsel %vm411, %v326, %v353
        %v432 = vsel %vm411, %v327, %v355
        %v435 = vsel %vm411, %v328, %v357
        %v438 = vsel %vm411, %v329, %v359
        %v441 = vsel %vm411, %v330, %v361
        %v444 = vsel %vm411, %v331, %v363
        %v447 = vsel %vm411, %v332, %v365
        %v450 = vsel %vm411, %v333, %v367
        %v453 = vsel %vm411, %v334, %v369
        %v456 = vsel %vm411, %v335, %v371
        %v459 = vsel %vm411, %v336, %v373
        %vm460 = vcmask 195584
        %v462 = vsel %vm460, %v414, %v380
        %v464 = vsel %vm460, %v417, %v382
        %v466 = vsel %vm460, %v420, %v384
        %v468 = vsel %vm460, %v423, %v386
        %v470 = vsel %vm460, %v426, %v388
        %v472 = vsel %vm460, %v429, %v390
        %v474 = vsel %vm460, %v432, %v392
        %v476 = vsel %vm460, %v435, %v394
        %v478 = vsel %vm460, %v438, %v396
        %v480 = vsel %vm460, %v441, %v398
        %v482 = vsel %vm460, %v444, %v400
        %v484 = vsel %vm460, %v447, %v402
        %v486 = vsel %vm460, %v450, %v404
        %v488 = vsel %vm460, %v453, %v406
        %v490 = vsel %vm460, %v456, %v408
        %v492 = vsel %vm460, %v459, %v410
        %v494 = vlaneseq
        %v495 = vshrl.u32 %v494, 7
        %v496 = vsub.s32 0, %v495
        %v497 = vrot.slane %v215, %v496
        %v504 = vunpack.c.l.b16 %v216
        %v505 = vunpack.c.l.b16 %v217
        %v506 = vunpack.c.l.b16 %v218
        %v507 = vunpack.c.l.b16 %v219
        %v508 = vunpack.c.l.b16 %v220
        %v509 = vpack.c.b16 %v505, %v504
        %v510 = vpack.c.b16 %v507, %v506
        %v511 = vpack.c.b16 %v508, %v508
        %vm514 = vcmask 293888
        %v515 = vsel %vm514, %v462, 0
        %v517 = vsel %vm514, %v464, 0
        %v519 = vsel %vm514, %v466, 0
        %v521 = vsel %vm514, %v468, 0
        %v523 = vsel %vm514, %v470, 0
        %v525 = vsel %vm514, %v472, 0
        %v527 = vsel %vm514, %v474, 0
        %v529 = vsel %vm514, %v476, 0
        %v531 = vsel %vm514, %v478, 0
        %v533 = vsel %vm514, %v480, 0
        %v535 = vsel %vm514, %v482, 0
        %v537 = vsel %vm514, %v484, 0
        %v539 = vsel %vm514, %v486, 0
        %v541 = vsel %vm514, %v488, 0
        %v543 = vsel %vm514, %v490, 0
        %v545 = vsel %vm514, %v492, 0
        %vm547 = vcmask 1041408
        %v549 = vsel %vm547, %v511, 0
        %551 = vmatprep.subr.bf16.mxu0 0
        %552 = vmatpush1.bf16.msra.mxu0 %v509
        %553 = vmatprep.subr.bf16.mxu0 0
        %554 = vmatpush1.bf16.msra.mxu0 %v510
        %555 = vmatprep.subr.bf16.mxu0 0
        %556 = vmatpush1.bf16.msra.mxu0 %v549
        %557 = vmatprep.subr.bf16.mxu0 0
        %558 = vmatpush1.bf16.msra.mxu0 0
        %559 = vmatprep.subr.bf16.mxu0 0
        %560 = vmatpush1.bf16.msra.mxu0 0
        %561 = vmatprep.subr.bf16.mxu0 0
        %562 = vmatpush1.bf16.msra.mxu0 0
        %563 = vmatprep.subr.bf16.mxu0 0
        %564 = vmatpush1.bf16.msra.mxu0 0
        %565 = vmatprep.subr.bf16.mxu0 0
        %566 = vmatpush1.bf16.msra.mxu0 0
        %567 = vmatprep.subr.bf16.mxu0 0
        %568 = vmatpush1.bf16.msra.mxu0 0
        %569 = vmatprep.subr.bf16.mxu0 0
        %570 = vmatpush1.bf16.msra.mxu0 0
        %571 = vmatprep.subr.bf16.mxu0 0
        %572 = vmatpush1.bf16.msra.mxu0 0
        %573 = vmatprep.subr.bf16.mxu0 0
        %574 = vmatpush1.bf16.msra.mxu0 0
        %575 = vmatprep.subr.bf16.mxu0 0
        %576 = vmatpush1.bf16.msra.mxu0 0
        %577 = vmatprep.subr.bf16.mxu0 0
        %578 = vmatpush1.bf16.msra.mxu0 0
        %579 = vmatprep.subr.bf16.mxu0 0
        %580 = vmatpush1.bf16.msra.mxu0 0
        %581 = vmatprep.subr.bf16.mxu0 0
        %582 = vmatpush1.bf16.msra.mxu0 0
        %583 = vmatprep.mubr.bf16.mxu0 0
        %584 = vmatmul.mubr.bf16.gmra.mrb[0].mxu0 %v515
        %v585 = vpop.f32.mrb[0].mxu0
        %v586 = vadd.f32 %v497, %v585
        %v587 = vpop.f32.mrb[0].mxu0
        %v588 = vpop.f32.mrb[0].mxu0
        %v589 = vadd.f32 %v497, %v588
        %v590 = vpop.f32.mrb[0].mxu0
        %591 = vmatprep.mubr.bf16.mxu0 0
        %592 = vmatmul.mubr.bf16.gmra.mrb[0].mxu0 %v517
        %v593 = vpop.f32.mrb[0].mxu0
        %v594 = vadd.f32 %v497, %v593
        %v595 = vpop.f32.mrb[0].mxu0
        %v596 = vpop.f32.mrb[0].mxu0
        %v597 = vadd.f32 %v497, %v596
        %v598 = vpop.f32.mrb[0].mxu0
        %599 = vmatprep.mubr.bf16.mxu0 0
        %600 = vmatmul.mubr.bf16.gmra.mrb[0].mxu0 %v519
        %v601 = vpop.f32.mrb[0].mxu0
        %v602 = vadd.f32 %v497, %v601
        %v603 = vpop.f32.mrb[0].mxu0
        %v604 = vpop.f32.mrb[0].mxu0
        %v605 = vadd.f32 %v497, %v604
        %v606 = vpop.f32.mrb[0].mxu0
        %607 = vmatprep.mubr.bf16.mxu0 0
        %608 = vmatmul.mubr.bf16.gmra.mrb[0].mxu0 %v521
        %v609 = vpop.f32.mrb[0].mxu0
        %v610 = vadd.f32 %v497, %v609
        %v611 = vpop.f32.mrb[0].mxu0
        %v612 = vpop.f32.mrb[0].mxu0
        %v613 = vadd.f32 %v497, %v612
        %v614 = vpop.f32.mrb[0].mxu0
        %615 = vmatprep.mubr.bf16.mxu0 0
        %616 = vmatmul.mubr.bf16.gmra.mrb[0].mxu0 %v523
        %v617 = vpop.f32.mrb[0].mxu0
        %v618 = vadd.f32 %v497, %v617
        %v619 = vpop.f32.mrb[0].mxu0
        %v620 = vpop.f32.mrb[0].mxu0
        %v621 = vadd.f32 %v497, %v620
        %v622 = vpop.f32.mrb[0].mxu0
        %623 = vmatprep.mubr.bf16.mxu0 0
        %624 = vmatmul.mubr.bf16.gmra.mrb[0].mxu0 %v525
        %v625 = vpop.f32.mrb[0].mxu0
        %v626 = vadd.f32 %v497, %v625
        %v627 = vpop.f32.mrb[0].mxu0
        %v628 = vpop.f32.mrb[0].mxu0
        %v629 = vadd.f32 %v497, %v628
        %v630 = vpop.f32.mrb[0].mxu0
        %631 = vmatprep.mubr.bf16.mxu0 0
        %632 = vmatmul.mubr.bf16.gmra.mrb[0].mxu0 %v527
        %v633 = vpop.f32.mrb[0].mxu0
        %v634 = vadd.f32 %v497, %v633
        %v635 = vpop.f32.mrb[0].mxu0
        %v636 = vpop.f32.mrb[0].mxu0
        %v637 = vadd.f32 %v497, %v636
        %v638 = vpop.f32.mrb[0].mxu0
        %639 = vmatprep.mubr.bf16.mxu0 0
        %640 = vmatmul.mubr.bf16.gmra.mrb[0].mxu0 %v529
        %v641 = vpop.f32.mrb[0].mxu0
        %v642 = vadd.f32 %v497, %v641
        %v643 = vpop.f32.mrb[0].mxu0
        %v644 = vpop.f32.mrb[0].mxu0
        %v645 = vadd.f32 %v497, %v644
        %v646 = vpop.f32.mrb[0].mxu0
        %647 = vmatprep.mubr.bf16.mxu0 0
        %648 = vmatmul.mubr.bf16.gmra.mrb[0].mxu0 %v531
        %v649 = vpop.f32.mrb[0].mxu0
        %v650 = vadd.f32 %v497, %v649
        %v651 = vpop.f32.mrb[0].mxu0
        %v652 = vpop.f32.mrb[0].mxu0
        %v653 = vadd.f32 %v497, %v652
        %v654 = vpop.f32.mrb[0].mxu0
        %655 = vmatprep.mubr.bf16.mxu0 0
        %656 = vmatmul.mubr.bf16.gmra.mrb[0].mxu0 %v533
        %v657 = vpop.f32.mrb[0].mxu0
        %v658 = vadd.f32 %v497, %v657
        %v659 = vpop.f32.mrb[0].mxu0
        %v660 = vpop.f32.mrb[0].mxu0
        %v661 = vadd.f32 %v497, %v660
        %v662 = vpop.f32.mrb[0].mxu0
        %663 = vmatprep.mubr.bf16.mxu0 0
        %664 = vmatmul.mubr.bf16.gmra.mrb[0].mxu0 %v535
        %v665 = vpop.f32.mrb[0].mxu0
        %v666 = vadd.f32 %v497, %v665
        %v667 = vpop.f32.mrb[0].mxu0
        %v668 = vpop.f32.mrb[0].mxu0
        %v669 = vadd.f32 %v497, %v668
        %v670 = vpop.f32.mrb[0].mxu0
        %671 = vmatprep.mubr.bf16.mxu0 0
        %672 = vmatmul.mubr.bf16.gmra.mrb[0].mxu0 %v537
        %v673 = vpop.f32.mrb[0].mxu0
        %v674 = vadd.f32 %v497, %v673
        %v675 = vpop.f32.mrb[0].mxu0
        %v676 = vpop.f32.mrb[0].mxu0
        %v677 = vadd.f32 %v497, %v676
        %v678 = vpop.f32.mrb[0].mxu0
        %679 = vmatprep.mubr.bf16.mxu0 0
        %680 = vmatmul.mubr.bf16.gmra.mrb[0].mxu0 %v539
        %v681 = vpop.f32.mrb[0].mxu0
        %v682 = vadd.f32 %v497, %v681
        %v683 = vpop.f32.mrb[0].mxu0
        %v684 = vpop.f32.mrb[0].mxu0
        %v685 = vadd.f32 %v497, %v684
        %v686 = vpop.f32.mrb[0].mxu0
        %687 = vmatprep.mubr.bf16.mxu0 0
        %688 = vmatmul.mubr.bf16.gmra.mrb[0].mxu0 %v541
        %v689 = vpop.f32.mrb[0].mxu0
        %v690 = vadd.f32 %v497, %v689
        %v691 = vpop.f32.mrb[0].mxu0
        %v692 = vpop.f32.mrb[0].mxu0
        %v693 = vadd.f32 %v497, %v692
        %v694 = vpop.f32.mrb[0].mxu0
        %695 = vmatprep.mubr.bf16.mxu0 0
        %696 = vmatmul.mubr.bf16.gmra.mrb[0].mxu0 %v543
        %v697 = vpop.f32.mrb[0].mxu0
        %v698 = vadd.f32 %v497, %v697
        %v699 = vpop.f32.mrb[0].mxu0
        %v700 = vpop.f32.mrb[0].mxu0
        %v701 = vadd.f32 %v497, %v700
        %v702 = vpop.f32.mrb[0].mxu0
        %703 = vmatprep.mubr.bf16.mxu0 0
        %704 = vmatmul.mubr.bf16.gmra.mrb[0].mxu0 %v545
        %v705 = vpop.f32.mrb[0].mxu0
        %v706 = vadd.f32 %v497, %v705
        %v707 = vpop.f32.mrb[0].mxu0
        %v708 = vpop.f32.mrb[0].mxu0
        %v709 = vadd.f32 %v497, %v708
        %v710 = vpop.f32.mrb[0].mxu0
        %711 = vdwg.mxu0
        %v712 = vpack.c.bf16 %v589, %v586
        %v713 = vpack.c.bf16 %v597, %v594
        %v714 = vpack.c.bf16 %v605, %v602
        %v715 = vpack.c.bf16 %v613, %v610
        %v716 = vpack.c.bf16 %v621, %v618
        %v717 = vpack.c.bf16 %v629, %v626
        %v718 = vpack.c.bf16 %v637, %v634
        %v719 = vpack.c.bf16 %v645, %v642
        %v720 = vpack.c.bf16 %v653, %v650
        %v721 = vpack.c.bf16 %v661, %v658
        %v722 = vpack.c.bf16 %v669, %v666
        %v723 = vpack.c.bf16 %v677, %v674
        %v724 = vpack.c.bf16 %v685, %v682
        %v725 = vpack.c.bf16 %v693, %v690
        %v726 = vpack.c.bf16 %v701, %v698
        %v727 = vpack.c.bf16 %v709, %v706
        %v728 = vmax.bf16 %v712, 0
        %v729 = vmax.bf16 %v713, 0
        %v730 = vmax.bf16 %v714, 0
        %v731 = vmax.bf16 %v715, 0
        %v732 = vmax.bf16 %v716, 0
        %v733 = vmax.bf16 %v717, 0
        %v734 = vmax.bf16 %v718, 0
        %v735 = vmax.bf16 %v719, 0
        %v736 = vmax.bf16 %v720, 0
        %v737 = vmax.bf16 %v721, 0
        %v738 = vmax.bf16 %v722, 0
        %v739 = vmax.bf16 %v723, 0
        %v740 = vmax.bf16 %v724, 0
        %v741 = vmax.bf16 %v725, 0
        %v742 = vmax.bf16 %v726, 0
        %v743 = vmax.bf16 %v727, 0
        %v760 = vunpack.c.l.b16 %v728
        %v761 = vunpack.c.h.b16 %v728
        %v762 = vunpack.c.l.b16 %v729
        %v763 = vunpack.c.h.b16 %v729
        %v764 = vunpack.c.l.b16 %v730
        %v765 = vunpack.c.h.b16 %v730
        %v766 = vunpack.c.l.b16 %v731
        %v767 = vunpack.c.h.b16 %v731
        %v768 = vunpack.c.l.b16 %v732
        %v769 = vunpack.c.h.b16 %v732
        %v770 = vunpack.c.l.b16 %v733
        %v771 = vunpack.c.h.b16 %v733
        %v772 = vunpack.c.l.b16 %v734
        %v773 = vunpack.c.h.b16 %v734
        %v774 = vunpack.c.l.b16 %v735
        %v775 = vunpack.c.h.b16 %v735
        %v776 = vunpack.c.l.b16 %v736
        %v777 = vunpack.c.h.b16 %v736
        %v778 = vunpack.c.l.b16 %v737
        %v779 = vunpack.c.h.b16 %v737
        %v780 = vunpack.c.l.b16 %v738
        %v781 = vunpack.c.h.b16 %v738
        %v782 = vunpack.c.l.b16 %v739
        %v783 = vunpack.c.h.b16 %v739
        %v784 = vunpack.c.l.b16 %v740
        %v785 = vunpack.c.h.b16 %v740
        %v786 = vunpack.c.l.b16 %v741
        %v787 = vunpack.c.h.b16 %v741
        %v788 = vunpack.c.l.b16 %v742
        %v789 = vunpack.c.h.b16 %v742
        %v790 = vunpack.c.l.b16 %v743
        %v791 = vunpack.c.h.b16 %v743
        %v792 = vpack.c.b16 %v760, %v760
        %v793 = vpack.c.b16 %v761, %v761
        %v794 = vpack.c.b16 %v762, %v762
        %v795 = vpack.c.b16 %v763, %v763
        %v796 = vpack.c.b16 %v764, %v764
        %v797 = vpack.c.b16 %v765, %v765
        %v798 = vpack.c.b16 %v766, %v766
        %v799 = vpack.c.b16 %v767, %v767
        %v800 = vpack.c.b16 %v768, %v768
        %v801 = vpack.c.b16 %v769, %v769
        %v802 = vpack.c.b16 %v770, %v770
        %v803 = vpack.c.b16 %v771, %v771
        %v804 = vpack.c.b16 %v772, %v772
        %v805 = vpack.c.b16 %v773, %v773
        %v806 = vpack.c.b16 %v774, %v774
        %v807 = vpack.c.b16 %v775, %v775
        %v808 = vpack.c.b16 %v776, %v776
        %v809 = vpack.c.b16 %v777, %v777
        %v810 = vpack.c.b16 %v778, %v778
        %v811 = vpack.c.b16 %v779, %v779
        %v812 = vpack.c.b16 %v780, %v780
        %v813 = vpack.c.b16 %v781, %v781
        %v814 = vpack.c.b16 %v782, %v782
        %v815 = vpack.c.b16 %v783, %v783
        %v816 = vpack.c.b16 %v784, %v784
        %v817 = vpack.c.b16 %v785, %v785
        %v818 = vpack.c.b16 %v786, %v786
        %v819 = vpack.c.b16 %v787, %v787
        %v820 = vpack.c.b16 %v788, %v788
        %v821 = vpack.c.b16 %v789, %v789
        %v822 = vpack.c.b16 %v790, %v790
        %v823 = vpack.c.b16 %v791, %v791
        %856 = vst [vmem:[%s201] sm:$0xf] %v792
        %857 = vst [vmem:[%s201 + $0x4] sm:$0xf] %v793
        %858 = vst [vmem:[%s201 + $0x8] sm:$0xf] %v794
        %859 = vst [vmem:[%s201 + $0xc] sm:$0xf] %v795
        %860 = vst [vmem:[%s201 + $0x10] sm:$0xf] %v796
        %861 = vst [vmem:[%s201 + $0x14] sm:$0xf] %v797
        %862 = vst [vmem:[%s201 + $0x18] sm:$0xf] %v798
        %863 = vst [vmem:[%s201 + $0x1c] sm:$0xf] %v799
        %864 = vst [vmem:[%s201 + $0x20] sm:$0xf] %v800
        %865 = vst [vmem:[%s201 + $0x24] sm:$0xf] %v801
        %866 = vst [vmem:[%s201 + $0x28] sm:$0xf] %v802
        %867 = vst [vmem:[%s201 + $0x2c] sm:$0xf] %v803
        %868 = vst [vmem:[%s201 + $0x30] sm:$0xf] %v804
        %869 = vst [vmem:[%s201 + $0x34] sm:$0xf] %v805
        %870 = vst [vmem:[%s201 + $0x38] sm:$0xf] %v806
        %871 = vst [vmem:[%s201 + $0x3c] sm:$0xf] %v807
        %872 = vst [vmem:[%s201 + $0x40] sm:$0xf] %v808
        %873 = vst [vmem:[%s201 + $0x44] sm:$0xf] %v809
        %874 = vst [vmem:[%s201 + $0x48] sm:$0xf] %v810
        %875 = vst [vmem:[%s201 + $0x4c] sm:$0xf] %v811
        %876 = vst [vmem:[%s201 + $0x50] sm:$0xf] %v812
        %877 = vst [vmem:[%s201 + $0x54] sm:$0xf] %v813
        %878 = vst [vmem:[%s201 + $0x58] sm:$0xf] %v814
        %879 = vst [vmem:[%s201 + $0x5c] sm:$0xf] %v815
        %880 = vst [vmem:[%s201 + $0x60] sm:$0xf] %v816
        %881 = vst [vmem:[%s201 + $0x64] sm:$0xf] %v817
        %882 = vst [vmem:[%s201 + $0x68] sm:$0xf] %v818
        %883 = vst [vmem:[%s201 + $0x6c] sm:$0xf] %v819
        %884 = vst [vmem:[%s201 + $0x70] sm:$0xf] %v820
        %885 = vst [vmem:[%s201 + $0x74] sm:$0xf] %v821
        %886 = vst [vmem:[%s201 + $0x78] sm:$0xf] %v822
        %887 = vst [vmem:[%s201 + $0x7c] sm:$0xf] %v823
        %s888 = sand.u32 %s117, 1
        %s889 = scalar_lea.sflag [#allocation3], %s888
        %s890 = sand.u32 %s117, 1
        %s891 = smul.addr %s890, 128
        %s892 = scalar_lea.vmem [#allocation2], %s891
        // Predicated region
        $region33: #{tpu_custom_call.1} parent=31 // pred_check
          %p893 = pneg %p127
        $region34: #{tpu_custom_call.1} parent=31 // pred_check_branch
          %895 = sbr.rel (%p893) target = $region36
        $region35: #{tpu_custom_call.1} parent=31 // pred_region
          %s897 = ssub.s32 2048, 2048
          %898 = vsyncadd %s889, %s897
          %s899 = smul.addr %s21, 32
          %s900 = sadd.s32 %s22, %s899
          %s901 = smul.addr %s900, 64
          %s902 = scalar_lea.hbm %s3, %s901
          %s903 = sshll.u32 %s892, 4
          %s904 = int_to_ptr.vmem [resolvable:$true] %s903
          %909 = dma.vmem_to_hbm [thread:$0]  %s904, 2048, %s902, %s889, 64, 64, 4
        $region36: #{tpu_custom_call.1} parent=31 // pred_fallthru
          _
      $region32: #{tpu_custom_call.1} parent=5 // pred_fallthru
        _
      %p910 = scmp.le.s32.totalorder 2, %s12
      // Predicated region
      $region37: #{tpu_custom_call.1} parent=5 // pred_check
        %p911 = pneg %p910
      $region38: #{tpu_custom_call.1} parent=5 // pred_check_branch
        %913 = sbr.rel (%p911) target = $region40
      $region39: #{tpu_custom_call.1} parent=5 // pred_region
        %s914 = ssub.s32 %s12, 2
        // Predicated region
        $region41: #{tpu_custom_call.1} parent=39 // pred_check
          %p915 = pneg %p133
        $region42: #{tpu_custom_call.1} parent=39 // pred_check_branch
          %917 = sbr.rel (%p915) target = $region44
        $region43: #{tpu_custom_call.1} parent=39 // pred_region
          %s918 = sand.u32 %s118, 1
          %s919 = scalar_lea.sflag [#allocation3], %s918
          %s920 = sand.u32 %s118, 1
          %s921 = smul.addr %s920, 128
          %s922 = scalar_lea.vmem [#allocation2], %s921
          %923 = dma.done %s919, 2048
        $region44: #{tpu_custom_call.1} parent=39 // pred_fallthru
          _
      $region40: #{tpu_custom_call.1} parent=5 // pred_fallthru
        _
    $region6: #{tpu_custom_call.1} parent=1 // loop_footer
      %s16 = sadd.s32 1, %s12
    $region7: #{tpu_custom_call.1} parent=1 // loop_footer_branch
      %11 = sbr.rel target = $region3
    $region8: #{tpu_custom_call.1} parent=1 // loop_exit
      _
    %924 = vsyncpa [#allocation3], 1
    %s925 = scalar_lea.sflag [#allocation3], 1
    %926 = vsyncpa %s925, 1

// kernel: tpu_custom_call.1
$region0: #{tpu_custom_call.1}
  #allocation0 [shape = 'u32[]', space=smem, size = 0x4, offset = 0x4, fixed_abs, tag = 'smem constant byte address 0x4 - core index']
  #allocation1 [shape = 'u32[144,128]{1,0:T(1,128)}', space=vmem, size = 0x12000, scoped, tag = 'internal scratch']
  %s0 = inlined_call_operand.vmem [shape: bf16[2,288,12], index: 0, kind: input, shape index: {}]
  %s1 = inlined_call_operand.vmem [shape: bf16[3,12,128], index: 1, kind: input, shape index: {}]
  %s2 = inlined_call_operand.vmem [shape: f32[1,128], index: 2, kind: input, shape index: {}]
  %s3 = inlined_call_operand.hbm [shape: bf16[2,256,128], index: 3, kind: output, shape index: {}]
  %s4 = sld [smem:[#allocation0]]
  $region45: #{tpu_custom_call.1} parent=0
    _
  %s6 = ssub.s32 1, %s4
  %s7 = scalar_select 0, %s6, %s4
  $region1: #{tpu_custom_call.1} parent=0
    #allocation2 [shape = 'u8[131072]{0}', space=vmem, size = 0x20000, scoped, tag = 'output window, operand 0']
    #allocation3 [shape = 's32[2]{0}', space=sflag, size = 0x8, scoped, tag = 'scoped memory for tpu_custom_call.1']
    %8 = vsyncpa [#allocation3], 0
    %s9 = scalar_lea.sflag [#allocation3], 1
    %10 = vsyncpa %s9, 0
    loop: start=0, step=1, limit=4
    $region2: #{tpu_custom_call.1} parent=1 // loop_pre_header
      _
    $region3: #{tpu_custom_call.1} parent=1 // loop_header
      %s12 = sphi 0, %s16
      %p13 = scmp.ge.s32.totalorder %s12, 4
      %s19 = sphi 0, %s31
      %s20 = sphi 0, %s27
      %s21 = sphi 0, %s19
      %s22 = sphi 0, %s20
      %s23 = sphi 0, %s21
      %s24 = sphi 0, %s22
      %s34 = sphi 0, %s36
      %s37 = sphi 0, %s34
      %s38 = sphi 0, %s37
      %s54 = sphi 0, %s38
      %s60 = sphi 0, %s62
      %s63 = sphi 0, %s60
      %s64 = sphi 0, %s63
      %s80 = sphi 0, %s64
      %s86 = sphi 0, %s88
      %s89 = sphi 0, %s86
      %s90 = sphi 0, %s89
      %s106 = sphi 0, %s90
      %s114 = sphi 0, %s116
      %s117 = sphi 0, %s114
      %s118 = sphi 0, %s117
      %s134 = sphi 0, %s118
    $region4: #{tpu_custom_call.1} parent=1 // loop_header_branch
      %15 = sbr.rel (%p13) target = $region8
    $region5: #{tpu_custom_call.1} parent=1 // loop_body
      %s17 = ssub.s32 %s12, 1
      %s18 = ssub.s32 %s12, 2
      %s25 = sadd.s32 1, %s20
      %p26 = scmp.ge.s32.totalorder %s25, 1
      %s27 = scalar_select %p26, 0, %s25
      %s28 = sadd.s32 1, %s19
      %s29 = scalar_select %p26, %s28, %s19
      %p30 = scmp.ge.s32.totalorder %s29, 2
      %s31 = scalar_select %p30, 0, %s29
      %s32 = ssub.s32 %s19, %s31
      %p33 = scmp.eq.s32.totalorder %s32, 0
      %s35 = sadd.s32 %s34, 1
      %s36 = scalar_select %p33, %s34, %s35
      %p39 = pneg %p33
      %p40 = scmp.eq.s32.totalorder %s12, 1
      %p41 = por %p39, %p40
      %p42 = scmp.ne.s32.totalorder %s34, %s37
      %p43 = scmp.eq.s32.totalorder %s12, 0
      %p44 = por %p42, %p43
      %p45 = scmp.ne.s32.totalorder %s34, %s37
      %p46 = scmp.eq.s32.totalorder %s17, 1
      %p47 = por %p45, %p46
      %p48 = scmp.ne.s32.totalorder %s37, %s38
      %p49 = scmp.eq.s32.totalorder %s17, 0
      %p50 = por %p48, %p49
      %p51 = scmp.ne.s32.totalorder %s37, %s38
      %p52 = scmp.eq.s32.totalorder %s18, 1
      %p53 = por %p51, %p52
      %p55 = scmp.ne.s32.totalorder %s38, %s54
      %p56 = scmp.eq.s32.totalorder %s18, 0
      %p57 = por %p55, %p56
      %s58 = ssub.s32 %s20, %s27
      %p59 = scmp.eq.s32.totalorder %s58, 0
      %s61 = sadd.s32 %s60, 1
      %s62 = scalar_select %p59, %s60, %s61
      %p65 = pneg %p59
      %p66 = scmp.eq.s32.totalorder %s12, 1
      %p67 = por %p65, %p66
      %p68 = scmp.ne.s32.totalorder %s60, %s63
      %p69 = scmp.eq.s32.totalorder %s12, 0
      %p70 = por %p68, %p69
      %p71 = scmp.ne.s32.totalorder %s60, %s63
      %p72 = scmp.eq.s32.totalorder %s17, 1
      %p73 = por %p71, %p72
      %p74 = scmp.ne.s32.totalorder %s63, %s64
      %p75 = scmp.eq.s32.totalorder %s17, 0
      %p76 = por %p74, %p75
      %p77 = scmp.ne.s32.totalorder %s63, %s64
      %p78 = scmp.eq.s32.totalorder %s18, 1
      %p79 = por %p77, %p78
      %p81 = scmp.ne.s32.totalorder %s64, %s80
      %p82 = scmp.eq.s32.totalorder %s18, 0
      %p83 = por %p81, %p82
      %s84 = ssub.s32 %s20, %s27
      %p85 = scmp.eq.s32.totalorder %s84, 0
      %s87 = sadd.s32 %s86, 1
      %s88 = scalar_select %p85, %s86, %s87
      %p91 = pneg %p85
      %p92 = scmp.eq.s32.totalorder %s12, 1
      %p93 = por %p91, %p92
      %p94 = scmp.ne.s32.totalorder %s86, %s89
      %p95 = scmp.eq.s32.totalorder %s12, 0
      %p96 = por %p94, %p95
      %p97 = scmp.ne.s32.totalorder %s86, %s89
      %p98 = scmp.eq.s32.totalorder %s17, 1
      %p99 = por %p97, %p98
      %p100 = scmp.ne.s32.totalorder %s89, %s90
      %p101 = scmp.eq.s32.totalorder %s17, 0
      %p102 = por %p100, %p101
      %p103 = scmp.ne.s32.totalorder %s89, %s90
      %p104 = scmp.eq.s32.totalorder %s18, 1
      %p105 = por %p103, %p104
      %p107 = scmp.ne.s32.totalorder %s90, %s106
      %p108 = scmp.eq.s32.totalorder %s18, 0
      %p109 = por %p107, %p108
      %s110 = ssub.s32 %s19, %s31
      %s111 = ssub.s32 %s20, %s27
      %s112 = sor.u32 %s110, %s111
      %p113 = scmp.eq.s32.totalorder %s112, 0
      %s115 = sadd.s32 %s114, 1
      %s116 = scalar_select %p113, %s114, %s115
      %p119 = pneg %p113
      %p120 = scmp.eq.s32.totalorder %s12, 1
      %p121 = por %p119, %p120
      %p122 = scmp.ne.s32.totalorder %s114, %s117
      %p123 = scmp.eq.s32.totalorder %s12, 0
      %p124 = por %p122, %p123
      %p125 = scmp.ne.s32.totalorder %s114, %s117
      %p126 = scmp.eq.s32.totalorder %s17, 1
      %p127 = por %p125, %p126
      %p128 = scmp.ne.s32.totalorder %s117, %s118
      %p129 = scmp.eq.s32.totalorder %s17, 0
      %p130 = por %p128, %p129
      %p131 = scmp.ne.s32.totalorder %s117, %s118
      %p132 = scmp.eq.s32.totalorder %s18, 1
      %p133 = por %p131, %p132
      %p135 = scmp.ne.s32.totalorder %s118, %s134
      %p136 = scmp.eq.s32.totalorder %s18, 0
      %p137 = por %p135, %p136
      %p138 = scmp.le.s32.totalorder 1, %s12
      %p139 = scmp.lt.s32.totalorder %s12, 3
      %p140 = pnand %p138, %p139
      %p141 = pneg %p140
      // Predicated region
      $region9: #{tpu_custom_call.1} parent=5 // pred_check
        _
      $region10: #{tpu_custom_call.1} parent=5 // pred_check_branch
        %143 = sbr.rel (%p140) target = $region12
      $region11: #{tpu_custom_call.1} parent=5 // pred_region
        %s144 = ssub.s32 %s12, 1
        // Predicated region
        $region13: #{tpu_custom_call.1} parent=11 // pred_check
          %p145 = pneg %p76
        $region14: #{tpu_custom_call.1} parent=11 // pred_check_branch
          %147 = sbr.rel (%p145) target = $region16
        $region15: #{tpu_custom_call.1} parent=11 // pred_region
          %p148 = scmp.lt.s32.totalorder %s22, 0
          %s149 = scalar_select %p148, %s22, 0
          %s150 = smul.addr %s149, 4
          %s151 = scalar_lea.vmem %s1, %s150
        $region16: #{tpu_custom_call.1} parent=11 // pred_fallthru
          _
        // Predicated region
        $region17: #{tpu_custom_call.1} parent=11 // pred_check
          %p152 = pneg %p102
        $region18: #{tpu_custom_call.1} parent=11 // pred_check_branch
          %154 = sbr.rel (%p152) target = $region20
        $region19: #{tpu_custom_call.1} parent=11 // pred_region
          %p155 = scmp.lt.s32.totalorder %s22, 0
          %s156 = scalar_select %p155, %s22, 0
          %s157 = scalar_lea.vmem %s2, %s156
        $region20: #{tpu_custom_call.1} parent=11 // pred_fallthru
          _
      $region12: #{tpu_custom_call.1} parent=5 // pred_fallthru
        _
      %p158 = scmp.lt.s32.totalorder %s12, 2
      // Predicated region
      $region21: #{tpu_custom_call.1} parent=5 // pred_check
        %p159 = pneg %p158
      $region22: #{tpu_custom_call.1} parent=5 // pred_check_branch
        %161 = sbr.rel (%p159) target = $region24
      $region23: #{tpu_custom_call.1} parent=5 // pred_region
        // Predicated region
        $region25: #{tpu_custom_call.1} parent=23 // pred_check
          %p162 = pneg %p44
        $region26: #{tpu_custom_call.1} parent=23 // pred_check_branch
          %164 = sbr.rel (%p162) target = $region28
        $region27: #{tpu_custom_call.1} parent=23 // pred_region
          %p165 = scmp.lt.s32.totalorder %s19, 1
          %s166 = scalar_select %p165, %s19, 1
          %s167 = smul.addr %s166, 36
          %s168 = smul.addr %s167, 4
          %s169 = scalar_lea.vmem %s0, %s168
        $region28: #{tpu_custom_call.1} parent=23 // pred_fallthru
          _
      $region24: #{tpu_custom_call.1} parent=5 // pred_fallthru
        _
      %p170 = scmp.le.s32.totalorder 1, %s12
      %p171 = scmp.lt.s32.totalorder %s12, 3
      %p172 = pnand %p170, %p171
      %p173 = pneg %p172
      // Predicated region
      $region29: #{tpu_custom_call.1} parent=5 // pred_check
        _
      $region30: #{tpu_custom_call.1} parent=5 // pred_check_branch
        %175 = sbr.rel (%p172) target = $region32
      $region31: #{tpu_custom_call.1} parent=5 // pred_region
        %s176 = ssub.s32 %s12, 1
        %p177 = scmp.lt.s32.totalorder %s21, 1
        %s178 = scalar_select %p177, %s21, 1
        %s179 = smul.addr %s178, 36
        %s180 = smul.addr %s179, 4
        %s181 = scalar_lea.vmem %s0, %s180
        %p182 = pneg %p50
        %p183 = pneg %p47
        %p184 = scmp.lt.s32.totalorder %s22, 0
        %s185 = scalar_select %p184, %s22, 0
        %s186 = smul.addr %s185, 4
        %s187 = scalar_lea.vmem %s1, %s186
        %p188 = pneg %p76
        %p189 = pneg %p73
        %p190 = scmp.lt.s32.totalorder %s22, 0
        %s191 = scalar_select %p190, %s22, 0
        %s192 = scalar_lea.vmem %s2, %s191
        %p193 = pneg %p102
        %p194 = pneg %p99
        %p195 = pneg %p130
        %p196 = pneg %p127
        %s197 = sand.u32 %s117, 1
        %s198 = scalar_lea.sflag [#allocation3], %s197
        %s199 = sand.u32 %s117, 1
        %s200 = smul.addr %s199, 128
        %s201 = scalar_lea.vmem [#allocation2], %s200
        %p202 = scmp.lt.s32.totalorder %s21, 1
        %s203 = scalar_select %p202, %s21, 1
        %s204 = smul.addr %s203, 36
        %s205 = smul.addr %s204, 4
        %s206 = scalar_lea.vmem %s0, %s205
        %p207 = scmp.lt.s32.totalorder %s22, 0
        %s208 = scalar_select %p207, %s22, 0
        %s209 = smul.addr %s208, 4
        %s210 = scalar_lea.vmem %s1, %s209
        %p211 = scmp.lt.s32.totalorder %s22, 0
        %s212 = scalar_select %p211, %s22, 0
        %s213 = scalar_lea.vmem %s2, %s212
        %v215 = vld [vmem:[%s213] sm:$0x1]
        %v216 = vld [vmem:[%s210] sm:$0xf]
        %v217 = vld [vmem:[%s210 + $0x4] sm:$0x3]
        %s218 = scalar_lea.vmem %s210, 8
        %v219 = vld [vmem:[%s218] sm:$0xf]
        %v220 = vld [vmem:[%s218 + $0x4] sm:$0x3]
        %s221 = scalar_lea.vmem %s210, 16
        %v222 = vld [vmem:[%s221] sm:$0xf]
        %v223 = vld [vmem:[%s221 + $0x4] sm:$0x3]
        %v224 = vld [vmem:[%s206] sm:$0xf]
        %v225 = vld [vmem:[%s206 + $0x4] sm:$0xf]
        %v226 = vld [vmem:[%s206 + $0x8] sm:$0xf]
        %v227 = vld [vmem:[%s206 + $0xc] sm:$0xf]
        %v228 = vld [vmem:[%s206 + $0x10] sm:$0xf]
        %v229 = vld [vmem:[%s206 + $0x14] sm:$0xf]
        %v230 = vld [vmem:[%s206 + $0x18] sm:$0xf]
        %v231 = vld [vmem:[%s206 + $0x1c] sm:$0xf]
        %v232 = vld [vmem:[%s206 + $0x20] sm:$0xf]
        %v233 = vld [vmem:[%s206 + $0x24] sm:$0xf]
        %v234 = vld [vmem:[%s206 + $0x28] sm:$0xf]
        %v235 = vld [vmem:[%s206 + $0x2c] sm:$0xf]
        %v236 = vld [vmem:[%s206 + $0x30] sm:$0xf]
        %v237 = vld [vmem:[%s206 + $0x34] sm:$0xf]
        %v238 = vld [vmem:[%s206 + $0x38] sm:$0xf]
        %v239 = vld [vmem:[%s206 + $0x3c] sm:$0xf]
        %v240 = vld [vmem:[%s206 + $0x40] sm:$0xf]
        %v241 = vld [vmem:[%s206 + $0x44] sm:$0xf]
        %v242 = vld [vmem:[%s206 + $0x48] sm:$0xf]
        %v243 = vld [vmem:[%s206 + $0x4c] sm:$0xf]
        %v244 = vld [vmem:[%s206 + $0x50] sm:$0xf]
        %v245 = vld [vmem:[%s206 + $0x54] sm:$0xf]
        %v246 = vld [vmem:[%s206 + $0x58] sm:$0xf]
        %v247 = vld [vmem:[%s206 + $0x5c] sm:$0xf]
        %v248 = vld [vmem:[%s206 + $0x60] sm:$0xf]
        %v249 = vld [vmem:[%s206 + $0x64] sm:$0xf]
        %v250 = vld [vmem:[%s206 + $0x68] sm:$0xf]
        %v251 = vld [vmem:[%s206 + $0x6c] sm:$0xf]
        %v252 = vld [vmem:[%s206 + $0x70] sm:$0xf]
        %v253 = vld [vmem:[%s206 + $0x74] sm:$0xf]
        %v254 = vld [vmem:[%s206 + $0x78] sm:$0xf]
        %v255 = vld [vmem:[%s206 + $0x7c] sm:$0xf]
        %v256 = vld [vmem:[%s206 + $0x80] sm:$0xf]
        %v257 = vld [vmem:[%s206 + $0x84] sm:$0xf]
        %v258 = vld [vmem:[%s206 + $0x88] sm:$0xf]
        %v259 = vld [vmem:[%s206 + $0x8c] sm:$0xf]
        %v292 = vunpack.c.l.b16 %v226
        %v293 = vunpack.c.l.b16 %v227
        %v294 = vunpack.c.l.b16 %v228
        %v295 = vunpack.c.l.b16 %v229
        %v296 = vunpack.c.l.b16 %v230
        %v297 = vunpack.c.l.b16 %v231
        %v298 = vunpack.c.l.b16 %v232
        %v299 = vunpack.c.l.b16 %v233
        %v300 = vunpack.c.l.b16 %v234
        %v301 = vunpack.c.l.b16 %v235
        %v302 = vunpack.c.l.b16 %v236
        %v303 = vunpack.c.l.b16 %v237
        %v304 = vunpack.c.l.b16 %v238
        %v305 = vunpack.c.l.b16 %v239
        %v306 = vunpack.c.l.b16 %v240
        %v307 = vunpack.c.l.b16 %v241
        %v308 = vunpack.c.l.b16 %v242
        %v309 = vunpack.c.l.b16 %v243
        %v310 = vunpack.c.l.b16 %v244
        %v311 = vunpack.c.l.b16 %v245
        %v312 = vunpack.c.l.b16 %v246
        %v313 = vunpack.c.l.b16 %v247
        %v314 = vunpack.c.l.b16 %v248
        %v315 = vunpack.c.l.b16 %v249
        %v316 = vunpack.c.l.b16 %v250
        %v317 = vunpack.c.l.b16 %v251
        %v318 = vunpack.c.l.b16 %v252
        %v319 = vunpack.c.l.b16 %v253
        %v320 = vunpack.c.l.b16 %v254
        %v321 = vunpack.c.l.b16 %v255
        %v322 = vunpack.c.l.b16 %v256
        %v323 = vunpack.c.l.b16 %v257
        %v324 = vpack.c.b16 %v293, %v292
        %v325 = vpack.c.b16 %v295, %v294
        %v326 = vpack.c.b16 %v297, %v296
        %v327 = vpack.c.b16 %v299, %v298
        %v328 = vpack.c.b16 %v301, %v300
        %v329 = vpack.c.b16 %v303, %v302
        %v330 = vpack.c.b16 %v305, %v304
        %v331 = vpack.c.b16 %v307, %v306
        %v332 = vpack.c.b16 %v309, %v308
        %v333 = vpack.c.b16 %v311, %v310
        %v334 = vpack.c.b16 %v313, %v312
        %v335 = vpack.c.b16 %v315, %v314
        %v336 = vpack.c.b16 %v317, %v316
        %v337 = vpack.c.b16 %v319, %v318
        %v338 = vpack.c.b16 %v321, %v320
        %v339 = vpack.c.b16 %v323, %v322
        %v342 = vunpack.c.l.b16 %v219
        %v343 = vunpack.c.l.b16 %v220
        %v344 = vpack.c.b16 %v343, %v342
        %vm345 = vcmask 97280
        %v347 = vsel %vm345, %v324, 0
        %v350 = vsel %vm345, %v325, 0
        %v353 = vsel %vm345, %v326, 0
        %v356 = vsel %vm345, %v327, 0
        %v359 = vsel %vm345, %v328, 0
        %v362 = vsel %vm345, %v329, 0
        %v365 = vsel %vm345, %v330, 0
        %v368 = vsel %vm345, %v331, 0
        %v371 = vsel %vm345, %v332, 0
        %v374 = vsel %vm345, %v333, 0
        %v377 = vsel %vm345, %v334, 0
        %v380 = vsel %vm345, %v335, 0
        %v383 = vsel %vm345, %v336, 0
        %v386 = vsel %vm345, %v337, 0
        %v389 = vsel %vm345, %v338, 0
        %v392 = vsel %vm345, %v339, 0
        %vm394 = vcmask 1045504
        %v396 = vsel %vm394, %v344, 0
        %398 = vmatprep.subr.bf16.mxu0 0
        %399 = vmatpush1.bf16.msra.mxu0 %v396
        %400 = vmatprep.subr.bf16.mxu0 0
        %401 = vmatpush1.bf16.msra.mxu0 0
        %402 = vmatprep.subr.bf16.mxu0 0
        %403 = vmatpush1.bf16.msra.mxu0 0
        %404 = vmatprep.subr.bf16.mxu0 0
        %405 = vmatpush1.bf16.msra.mxu0 0
        %406 = vmatprep.subr.bf16.mxu0 0
        %407 = vmatpush1.bf16.msra.mxu0 0
        %408 = vmatprep.subr.bf16.mxu0 0
        %409 = vmatpush1.bf16.msra.mxu0 0
        %410 = vmatprep.subr.bf16.mxu0 0
        %411 = vmatpush1.bf16.msra.mxu0 0
        %412 = vmatprep.subr.bf16.mxu0 0
        %413 = vmatpush1.bf16.msra.mxu0 0
        %414 = vmatprep.subr.bf16.mxu0 0
        %415 = vmatpush1.bf16.msra.mxu0 0
        %416 = vmatprep.subr.bf16.mxu0 0
        %417 = vmatpush1.bf16.msra.mxu0 0
        %418 = vmatprep.subr.bf16.mxu0 0
        %419 = vmatpush1.bf16.msra.mxu0 0
        %420 = vmatprep.subr.bf16.mxu0 0
        %421 = vmatpush1.bf16.msra.mxu0 0
        %422 = vmatprep.subr.bf16.mxu0 0
        %423 = vmatpush1.bf16.msra.mxu0 0
        %424 = vmatprep.subr.bf16.mxu0 0
        %425 = vmatpush1.bf16.msra.mxu0 0
        %426 = vmatprep.subr.bf16.mxu0 0
        %427 = vmatpush1.bf16.msra.mxu0 0
        %428 = vmatprep.subr.bf16.mxu0 0
        %429 = vmatpush1.bf16.msra.mxu0 0
        %430 = vmatprep.mubr.bf16.mxu0 0
        %431 = vmatmul.mubr.bf16.gmra.mrb[0].mxu0 %v347
        %v432 = vpop.f32.mrb[0].mxu0
        %v433 = vadd.f32 0.0, %v432
        %v434 = vpop.f32.mrb[0].mxu0
        %v435 = vpop.f32.mrb[0].mxu0
        %v436 = vadd.f32 0.0, %v435
        %v437 = vpop.f32.mrb[0].mxu0
        %438 = vmatprep.mubr.bf16.mxu0 0
        %439 = vmatmul.mubr.bf16.gmra.mrb[0].mxu0 %v350
        %v440 = vpop.f32.mrb[0].mxu0
        %v441 = vadd.f32 0.0, %v440
        %v442 = vpop.f32.mrb[0].mxu0
        %v443 = vpop.f32.mrb[0].mxu0
        %v444 = vadd.f32 0.0, %v443
        %v445 = vpop.f32.mrb[0].mxu0
        %446 = vmatprep.mubr.bf16.mxu0 0
        %447 = vmatmul.mubr.bf16.gmra.mrb[0].mxu0 %v353
        %v448 = vpop.f32.mrb[0].mxu0
        %v449 = vadd.f32 0.0, %v448
        %v450 = vpop.f32.mrb[0].mxu0
        %v451 = vpop.f32.mrb[0].mxu0
        %v452 = vadd.f32 0.0, %v451
        %v453 = vpop.f32.mrb[0].mxu0
        %454 = vmatprep.mubr.bf16.mxu0 0
        %455 = vmatmul.mubr.bf16.gmra.mrb[0].mxu0 %v356
        %v456 = vpop.f32.mrb[0].mxu0
        %v457 = vadd.f32 0.0, %v456
        %v458 = vpop.f32.mrb[0].mxu0
        %v459 = vpop.f32.mrb[0].mxu0
        %v460 = vadd.f32 0.0, %v459
        %v461 = vpop.f32.mrb[0].mxu0
        %462 = vmatprep.mubr.bf16.mxu0 0
        %463 = vmatmul.mubr.bf16.gmra.mrb[0].mxu0 %v359
        %v464 = vpop.f32.mrb[0].mxu0
        %v465 = vadd.f32 0.0, %v464
        %v466 = vpop.f32.mrb[0].mxu0
        %v467 = vpop.f32.mrb[0].mxu0
        %v468 = vadd.f32 0.0, %v467
        %v469 = vpop.f32.mrb[0].mxu0
        %470 = vmatprep.mubr.bf16.mxu0 0
        %471 = vmatmul.mubr.bf16.gmra.mrb[0].mxu0 %v362
        %v472 = vpop.f32.mrb[0].mxu0
        %v473 = vadd.f32 0.0, %v472
        %v474 = vpop.f32.mrb[0].mxu0
        %v475 = vpop.f32.mrb[0].mxu0
        %v476 = vadd.f32 0.0, %v475
        %v477 = vpop.f32.mrb[0].mxu0
        %478 = vmatprep.mubr.bf16.mxu0 0
        %479 = vmatmul.mubr.bf16.gmra.mrb[0].mxu0 %v365
        %v480 = vpop.f32.mrb[0].mxu0
        %v481 = vadd.f32 0.0, %v480
        %v482 = vpop.f32.mrb[0].mxu0
        %v483 = vpop.f32.mrb[0].mxu0
        %v484 = vadd.f32 0.0, %v483
        %v485 = vpop.f32.mrb[0].mxu0
        %486 = vmatprep.mubr.bf16.mxu0 0
        %487 = vmatmul.mubr.bf16.gmra.mrb[0].mxu0 %v368
        %v488 = vpop.f32.mrb[0].mxu0
        %v489 = vadd.f32 0.0, %v488
        %v490 = vpop.f32.mrb[0].mxu0
        %v491 = vpop.f32.mrb[0].mxu0
        %v492 = vadd.f32 0.0, %v491
        %v493 = vpop.f32.mrb[0].mxu0
        %494 = vmatprep.mubr.bf16.mxu0 0
        %495 = vmatmul.mubr.bf16.gmra.mrb[0].mxu0 %v371
        %v496 = vpop.f32.mrb[0].mxu0
        %v497 = vadd.f32 0.0, %v496
        %v498 = vpop.f32.mrb[0].mxu0
        %v499 = vpop.f32.mrb[0].mxu0
        %v500 = vadd.f32 0.0, %v499
        %v501 = vpop.f32.mrb[0].mxu0
        %502 = vmatprep.mubr.bf16.mxu0 0
        %503 = vmatmul.mubr.bf16.gmra.mrb[0].mxu0 %v374
        %v504 = vpop.f32.mrb[0].mxu0
        %v505 = vadd.f32 0.0, %v504
        %v506 = vpop.f32.mrb[0].mxu0
        %v507 = vpop.f32.mrb[0].mxu0
        %v508 = vadd.f32 0.0, %v507
        %v509 = vpop.f32.mrb[0].mxu0
        %510 = vmatprep.mubr.bf16.mxu0 0
        %511 = vmatmul.mubr.bf16.gmra.mrb[0].mxu0 %v377
        %v512 = vpop.f32.mrb[0].mxu0
        %v513 = vadd.f32 0.0, %v512
        %v514 = vpop.f32.mrb[0].mxu0
        %v515 = vpop.f32.mrb[0].mxu0
        %v516 = vadd.f32 0.0, %v515
        %v517 = vpop.f32.mrb[0].mxu0
        %518 = vmatprep.mubr.bf16.mxu0 0
        %519 = vmatmul.mubr.bf16.gmra.mrb[0].mxu0 %v380
        %v520 = vpop.f32.mrb[0].mxu0
        %v521 = vadd.f32 0.0, %v520
        %v522 = vpop.f32.mrb[0].mxu0
        %v523 = vpop.f32.mrb[0].mxu0
        %v524 = vadd.f32 0.0, %v523
        %v525 = vpop.f32.mrb[0].mxu0
        %526 = vmatprep.mubr.bf16.mxu0 0
        %527 = vmatmul.mubr.bf16.gmra.mrb[0].mxu0 %v383
        %v528 = vpop.f32.mrb[0].mxu0
        %v529 = vadd.f32 0.0, %v528
        %v530 = vpop.f32.mrb[0].mxu0
        %v531 = vpop.f32.mrb[0].mxu0
        %v532 = vadd.f32 0.0, %v531
        %v533 = vpop.f32.mrb[0].mxu0
        %534 = vmatprep.mubr.bf16.mxu0 0
        %535 = vmatmul.mubr.bf16.gmra.mrb[0].mxu0 %v386
        %v536 = vpop.f32.mrb[0].mxu0
        %v537 = vadd.f32 0.0, %v536
        %v538 = vpop.f32.mrb[0].mxu0
        %v539 = vpop.f32.mrb[0].mxu0
        %v540 = vadd.f32 0.0, %v539
        %v541 = vpop.f32.mrb[0].mxu0
        %542 = vmatprep.mubr.bf16.mxu0 0
        %543 = vmatmul.mubr.bf16.gmra.mrb[0].mxu0 %v389
        %v544 = vpop.f32.mrb[0].mxu0
        %v545 = vadd.f32 0.0, %v544
        %v546 = vpop.f32.mrb[0].mxu0
        %v547 = vpop.f32.mrb[0].mxu0
        %v548 = vadd.f32 0.0, %v547
        %v549 = vpop.f32.mrb[0].mxu0
        %550 = vmatprep.mubr.bf16.mxu0 0
        %551 = vmatmul.mubr.bf16.gmra.mrb[0].mxu0 %v392
        %v552 = vpop.f32.mrb[0].mxu0
        %v553 = vadd.f32 0.0, %v552
        %v554 = vpop.f32.mrb[0].mxu0
        %v555 = vpop.f32.mrb[0].mxu0
        %v556 = vadd.f32 0.0, %v555
        %v557 = vpop.f32.mrb[0].mxu0
        %558 = vdwg.mxu0
        %v561 = vunpack.c.l.b16 %v224
        %v562 = vunpack.c.l.b16 %v225
        %v563 = vpack.c.b16 %v562, %v561
        %v566 = vunpack.c.l.b16 %v216
        %v567 = vunpack.c.l.b16 %v217
        %v568 = vpack.c.b16 %v567, %v566
        %v570 = vsel %vm345, %v563, 0
        %v573 = vsel %vm394, %v568, 0
        %575 = vmatprep.subr.bf16.mxu0 0
        %576 = vmatpush1.bf16.msra.mxu0 %v573
        %577 = vmatprep.subr.bf16.mxu0 0
        %578 = vmatpush1.bf16.msra.mxu0 0
        %579 = vmatprep.subr.bf16.mxu0 0
        %580 = vmatpush1.bf16.msra.mxu0 0
        %581 = vmatprep.subr.bf16.mxu0 0
        %582 = vmatpush1.bf16.msra.mxu0 0
        %583 = vmatprep.subr.bf16.mxu0 0
        %584 = vmatpush1.bf16.msra.mxu0 0
        %585 = vmatprep.subr.bf16.mxu0 0
        %586 = vmatpush1.bf16.msra.mxu0 0
        %587 = vmatprep.subr.bf16.mxu0 0
        %588 = vmatpush1.bf16.msra.mxu0 0
        %589 = vmatprep.subr.bf16.mxu0 0
        %590 = vmatpush1.bf16.msra.mxu0 0
        %591 = vmatprep.subr.bf16.mxu0 0
        %592 = vmatpush1.bf16.msra.mxu0 0
        %593 = vmatprep.subr.bf16.mxu0 0
        %594 = vmatpush1.bf16.msra.mxu0 0
        %595 = vmatprep.subr.bf16.mxu0 0
        %596 = vmatpush1.bf16.msra.mxu0 0
        %597 = vmatprep.subr.bf16.mxu0 0
        %598 = vmatpush1.bf16.msra.mxu0 0
        %599 = vmatprep.subr.bf16.mxu0 0
        %600 = vmatpush1.bf16.msra.mxu0 0
        %601 = vmatprep.subr.bf16.mxu0 0
        %602 = vmatpush1.bf16.msra.mxu0 0
        %603 = vmatprep.subr.bf16.mxu0 0
        %604 = vmatpush1.bf16.msra.mxu0 0
        %605 = vmatprep.subr.bf16.mxu0 0
        %606 = vmatpush1.bf16.msra.mxu0 0
        %607 = vmatprep.mubr.bf16.mxu0 0
        %608 = vmatmul.mubr.bf16.gmra.mrb[0].mxu0 %v570
        %v609 = vpop.f32.mrb[0].mxu0
        %v610 = vadd.f32 %v433, %v609
        %v611 = vpop.f32.mrb[0].mxu0
        %v612 = vpop.f32.mrb[0].mxu0
        %v613 = vadd.f32 %v436, %v612
        %v614 = vpop.f32.mrb[0].mxu0
        %615 = vmatprep.mubr.bf16.mxu0 0
        %616 = vmatmul.mubr.bf16.gmra.mrb[0].mxu0 %v347
        %v617 = vpop.f32.mrb[0].mxu0
        %v618 = vadd.f32 %v441, %v617
        %v619 = vpop.f32.mrb[0].mxu0
        %v620 = vpop.f32.mrb[0].mxu0
        %v621 = vadd.f32 %v444, %v620
        %v622 = vpop.f32.mrb[0].mxu0
        %623 = vmatprep.mubr.bf16.mxu0 0
        %624 = vmatmul.mubr.bf16.gmra.mrb[0].mxu0 %v350
        %v625 = vpop.f32.mrb[0].mxu0
        %v626 = vadd.f32 %v449, %v625
        %v627 = vpop.f32.mrb[0].mxu0
        %v628 = vpop.f32.mrb[0].mxu0
        %v629 = vadd.f32 %v452, %v628
        %v630 = vpop.f32.mrb[0].mxu0
        %631 = vmatprep.mubr.bf16.mxu0 0
        %632 = vmatmul.mubr.bf16.gmra.mrb[0].mxu0 %v353
        %v633 = vpop.f32.mrb[0].mxu0
        %v634 = vadd.f32 %v457, %v633
        %v635 = vpop.f32.mrb[0].mxu0
        %v636 = vpop.f32.mrb[0].mxu0
        %v637 = vadd.f32 %v460, %v636
        %v638 = vpop.f32.mrb[0].mxu0
        %639 = vmatprep.mubr.bf16.mxu0 0
        %640 = vmatmul.mubr.bf16.gmra.mrb[0].mxu0 %v356
        %v641 = vpop.f32.mrb[0].mxu0
        %v642 = vadd.f32 %v465, %v641
        %v643 = vpop.f32.mrb[0].mxu0
        %v644 = vpop.f32.mrb[0].mxu0
        %v645 = vadd.f32 %v468, %v644
        %v646 = vpop.f32.mrb[0].mxu0
        %647 = vmatprep.mubr.bf16.mxu0 0
        %648 = vmatmul.mubr.bf16.gmra.mrb[0].mxu0 %v359
        %v649 = vpop.f32.mrb[0].mxu0
        %v650 = vadd.f32 %v473, %v649
        %v651 = vpop.f32.mrb[0].mxu0
        %v652 = vpop.f32.mrb[0].mxu0
        %v653 = vadd.f32 %v476, %v652
        %v654 = vpop.f32.mrb[0].mxu0
        %655 = vmatprep.mubr.bf16.mxu0 0
        %656 = vmatmul.mubr.bf16.gmra.mrb[0].mxu0 %v362
        %v657 = vpop.f32.mrb[0].mxu0
        %v658 = vadd.f32 %v481, %v657
        %v659 = vpop.f32.mrb[0].mxu0
        %v660 = vpop.f32.mrb[0].mxu0
        %v661 = vadd.f32 %v484, %v660
        %v662 = vpop.f32.mrb[0].mxu0
        %663 = vmatprep.mubr.bf16.mxu0 0
        %664 = vmatmul.mubr.bf16.gmra.mrb[0].mxu0 %v365
        %v665 = vpop.f32.mrb[0].mxu0
        %v666 = vadd.f32 %v489, %v665
        %v667 = vpop.f32.mrb[0].mxu0
        %v668 = vpop.f32.mrb[0].mxu0
        %v669 = vadd.f32 %v492, %v668
        %v670 = vpop.f32.mrb[0].mxu0
        %671 = vmatprep.mubr.bf16.mxu0 0
        %672 = vmatmul.mubr.bf16.gmra.mrb[0].mxu0 %v368
        %v673 = vpop.f32.mrb[0].mxu0
        %v674 = vadd.f32 %v497, %v673
        %v675 = vpop.f32.mrb[0].mxu0
        %v676 = vpop.f32.mrb[0].mxu0
        %v677 = vadd.f32 %v500, %v676
        %v678 = vpop.f32.mrb[0].mxu0
        %679 = vmatprep.mubr.bf16.mxu0 0
        %680 = vmatmul.mubr.bf16.gmra.mrb[0].mxu0 %v371
        %v681 = vpop.f32.mrb[0].mxu0
        %v682 = vadd.f32 %v505, %v681
        %v683 = vpop.f32.mrb[0].mxu0
        %v684 = vpop.f32.mrb[0].mxu0
        %v685 = vadd.f32 %v508, %v684
        %v686 = vpop.f32.mrb[0].mxu0
        %687 = vmatprep.mubr.bf16.mxu0 0
        %688 = vmatmul.mubr.bf16.gmra.mrb[0].mxu0 %v374
        %v689 = vpop.f32.mrb[0].mxu0
        %v690 = vadd.f32 %v513, %v689
        %v691 = vpop.f32.mrb[0].mxu0
        %v692 = vpop.f32.mrb[0].mxu0
        %v693 = vadd.f32 %v516, %v692
        %v694 = vpop.f32.mrb[0].mxu0
        %695 = vmatprep.mubr.bf16.mxu0 0
        %696 = vmatmul.mubr.bf16.gmra.mrb[0].mxu0 %v377
        %v697 = vpop.f32.mrb[0].mxu0
        %v698 = vadd.f32 %v521, %v697
        %v699 = vpop.f32.mrb[0].mxu0
        %v700 = vpop.f32.mrb[0].mxu0
        %v701 = vadd.f32 %v524, %v700
        %v702 = vpop.f32.mrb[0].mxu0
        %703 = vmatprep.mubr.bf16.mxu0 0
        %704 = vmatmul.mubr.bf16.gmra.mrb[0].mxu0 %v380
        %v705 = vpop.f32.mrb[0].mxu0
        %v706 = vadd.f32 %v529, %v705
        %v707 = vpop.f32.mrb[0].mxu0
        %v708 = vpop.f32.mrb[0].mxu0
        %v709 = vadd.f32 %v532, %v708
        %v710 = vpop.f32.mrb[0].mxu0
        %711 = vmatprep.mubr.bf16.mxu0 0
        %712 = vmatmul.mubr.bf16.gmra.mrb[0].mxu0 %v383
        %v713 = vpop.f32.mrb[0].mxu0
        %v714 = vadd.f32 %v537, %v713
        %v715 = vpop.f32.mrb[0].mxu0
        %v716 = vpop.f32.mrb[0].mxu0
        %v717 = vadd.f32 %v540, %v716
        %v718 = vpop.f32.mrb[0].mxu0
        %719 = vmatprep.mubr.bf16.mxu0 0
        %720 = vmatmul.mubr.bf16.gmra.mrb[0].mxu0 %v386
        %v721 = vpop.f32.mrb[0].mxu0
        %v722 = vadd.f32 %v545, %v721
        %v723 = vpop.f32.mrb[0].mxu0
        %v724 = vpop.f32.mrb[0].mxu0
        %v725 = vadd.f32 %v548, %v724
        %v726 = vpop.f32.mrb[0].mxu0
        %727 = vmatprep.mubr.bf16.mxu0 0
        %728 = vmatmul.mubr.bf16.gmra.mrb[0].mxu0 %v389
        %v729 = vpop.f32.mrb[0].mxu0
        %v730 = vadd.f32 %v553, %v729
        %v731 = vpop.f32.mrb[0].mxu0
        %v732 = vpop.f32.mrb[0].mxu0
        %v733 = vadd.f32 %v556, %v732
        %v734 = vpop.f32.mrb[0].mxu0
        %735 = vdwg.mxu0
        %v738 = vunpack.c.l.b16 %v258
        %v739 = vunpack.c.l.b16 %v259
        %v740 = vpack.c.b16 %v739, %v738
        %v743 = vunpack.c.l.b16 %v222
        %v744 = vunpack.c.l.b16 %v223
        %v745 = vpack.c.b16 %v744, %v743
        %v747 = vsel %vm345, %v740, 0
        %v750 = vsel %vm394, %v745, 0
        %752 = vmatprep.subr.bf16.mxu0 0
        %753 = vmatpush1.bf16.msra.mxu0 %v750
        %754 = vmatprep.subr.bf16.mxu0 0
        %755 = vmatpush1.bf16.msra.mxu0 0
        %756 = vmatprep.subr.bf16.mxu0 0
        %757 = vmatpush1.bf16.msra.mxu0 0
        %758 = vmatprep.subr.bf16.mxu0 0
        %759 = vmatpush1.bf16.msra.mxu0 0
        %760 = vmatprep.subr.bf16.mxu0 0
        %761 = vmatpush1.bf16.msra.mxu0 0
        %762 = vmatprep.subr.bf16.mxu0 0
        %763 = vmatpush1.bf16.msra.mxu0 0
        %764 = vmatprep.subr.bf16.mxu0 0
        %765 = vmatpush1.bf16.msra.mxu0 0
        %766 = vmatprep.subr.bf16.mxu0 0
        %767 = vmatpush1.bf16.msra.mxu0 0
        %768 = vmatprep.subr.bf16.mxu0 0
        %769 = vmatpush1.bf16.msra.mxu0 0
        %770 = vmatprep.subr.bf16.mxu0 0
        %771 = vmatpush1.bf16.msra.mxu0 0
        %772 = vmatprep.subr.bf16.mxu0 0
        %773 = vmatpush1.bf16.msra.mxu0 0
        %774 = vmatprep.subr.bf16.mxu0 0
        %775 = vmatpush1.bf16.msra.mxu0 0
        %776 = vmatprep.subr.bf16.mxu0 0
        %777 = vmatpush1.bf16.msra.mxu0 0
        %778 = vmatprep.subr.bf16.mxu0 0
        %779 = vmatpush1.bf16.msra.mxu0 0
        %780 = vmatprep.subr.bf16.mxu0 0
        %781 = vmatpush1.bf16.msra.mxu0 0
        %782 = vmatprep.subr.bf16.mxu0 0
        %783 = vmatpush1.bf16.msra.mxu0 0
        %784 = vmatprep.mubr.bf16.mxu0 0
        %785 = vmatmul.mubr.bf16.gmra.mrb[0].mxu0 %v350
        %v786 = vpop.f32.mrb[0].mxu0
        %v787 = vadd.f32 0.0, %v786
        %v788 = vpop.f32.mrb[0].mxu0
        %v789 = vpop.f32.mrb[0].mxu0
        %v790 = vadd.f32 0.0, %v789
        %v791 = vpop.f32.mrb[0].mxu0
        %792 = vmatprep.mubr.bf16.mxu0 0
        %793 = vmatmul.mubr.bf16.gmra.mrb[0].mxu0 %v353
        %v794 = vpop.f32.mrb[0].mxu0
        %v795 = vadd.f32 0.0, %v794
        %v796 = vpop.f32.mrb[0].mxu0
        %v797 = vpop.f32.mrb[0].mxu0
        %v798 = vadd.f32 0.0, %v797
        %v799 = vpop.f32.mrb[0].mxu0
        %800 = vmatprep.mubr.bf16.mxu0 0
        %801 = vmatmul.mubr.bf16.gmra.mrb[0].mxu0 %v356
        %v802 = vpop.f32.mrb[0].mxu0
        %v803 = vadd.f32 0.0, %v802
        %v804 = vpop.f32.mrb[0].mxu0
        %v805 = vpop.f32.mrb[0].mxu0
        %v806 = vadd.f32 0.0, %v805
        %v807 = vpop.f32.mrb[0].mxu0
        %808 = vmatprep.mubr.bf16.mxu0 0
        %809 = vmatmul.mubr.bf16.gmra.mrb[0].mxu0 %v359
        %v810 = vpop.f32.mrb[0].mxu0
        %v811 = vadd.f32 0.0, %v810
        %v812 = vpop.f32.mrb[0].mxu0
        %v813 = vpop.f32.mrb[0].mxu0
        %v814 = vadd.f32 0.0, %v813
        %v815 = vpop.f32.mrb[0].mxu0
        %816 = vmatprep.mubr.bf16.mxu0 0
        %817 = vmatmul.mubr.bf16.gmra.mrb[0].mxu0 %v362
        %v818 = vpop.f32.mrb[0].mxu0
        %v819 = vadd.f32 0.0, %v818
        %v820 = vpop.f32.mrb[0].mxu0
        %v821 = vpop.f32.mrb[0].mxu0
        %v822 = vadd.f32 0.0, %v821
        %v823 = vpop.f32.mrb[0].mxu0
        %824 = vmatprep.mubr.bf16.mxu0 0
        %825 = vmatmul.mubr.bf16.gmra.mrb[0].mxu0 %v365
        %v826 = vpop.f32.mrb[0].mxu0
        %v827 = vadd.f32 0.0, %v826
        %v828 = vpop.f32.mrb[0].mxu0
        %v829 = vpop.f32.mrb[0].mxu0
        %v830 = vadd.f32 0.0, %v829
        %v831 = vpop.f32.mrb[0].mxu0
        %832 = vmatprep.mubr.bf16.mxu0 0
        %833 = vmatmul.mubr.bf16.gmra.mrb[0].mxu0 %v368
        %v834 = vpop.f32.mrb[0].mxu0
        %v835 = vadd.f32 0.0, %v834
        %v836 = vpop.f32.mrb[0].mxu0
        %v837 = vpop.f32.mrb[0].mxu0
        %v838 = vadd.f32 0.0, %v837
        %v839 = vpop.f32.mrb[0].mxu0
        %840 = vmatprep.mubr.bf16.mxu0 0
        %841 = vmatmul.mubr.bf16.gmra.mrb[0].mxu0 %v371
        %v842 = vpop.f32.mrb[0].mxu0
        %v843 = vadd.f32 0.0, %v842
        %v844 = vpop.f32.mrb[0].mxu0
        %v845 = vpop.f32.mrb[0].mxu0
        %v846 = vadd.f32 0.0, %v845
        %v847 = vpop.f32.mrb[0].mxu0
        %848 = vmatprep.mubr.bf16.mxu0 0
        %849 = vmatmul.mubr.bf16.gmra.mrb[0].mxu0 %v374
        %v850 = vpop.f32.mrb[0].mxu0
        %v851 = vadd.f32 0.0, %v850
        %v852 = vpop.f32.mrb[0].mxu0
        %v853 = vpop.f32.mrb[0].mxu0
        %v854 = vadd.f32 0.0, %v853
        %v855 = vpop.f32.mrb[0].mxu0
        %856 = vmatprep.mubr.bf16.mxu0 0
        %857 = vmatmul.mubr.bf16.gmra.mrb[0].mxu0 %v377
        %v858 = vpop.f32.mrb[0].mxu0
        %v859 = vadd.f32 0.0, %v858
        %v860 = vpop.f32.mrb[0].mxu0
        %v861 = vpop.f32.mrb[0].mxu0
        %v862 = vadd.f32 0.0, %v861
        %v863 = vpop.f32.mrb[0].mxu0
        %864 = vmatprep.mubr.bf16.mxu0 0
        %865 = vmatmul.mubr.bf16.gmra.mrb[0].mxu0 %v380
        %v866 = vpop.f32.mrb[0].mxu0
        %v867 = vadd.f32 0.0, %v866
        %v868 = vpop.f32.mrb[0].mxu0
        %v869 = vpop.f32.mrb[0].mxu0
        %v870 = vadd.f32 0.0, %v869
        %v871 = vpop.f32.mrb[0].mxu0
        %872 = vmatprep.mubr.bf16.mxu0 0
        %873 = vmatmul.mubr.bf16.gmra.mrb[0].mxu0 %v383
        %v874 = vpop.f32.mrb[0].mxu0
        %v875 = vadd.f32 0.0, %v874
        %v876 = vpop.f32.mrb[0].mxu0
        %v877 = vpop.f32.mrb[0].mxu0
        %v878 = vadd.f32 0.0, %v877
        %v879 = vpop.f32.mrb[0].mxu0
        %880 = vmatprep.mubr.bf16.mxu0 0
        %881 = vmatmul.mubr.bf16.gmra.mrb[0].mxu0 %v386
        %v882 = vpop.f32.mrb[0].mxu0
        %v883 = vadd.f32 0.0, %v882
        %v884 = vpop.f32.mrb[0].mxu0
        %v885 = vpop.f32.mrb[0].mxu0
        %v886 = vadd.f32 0.0, %v885
        %v887 = vpop.f32.mrb[0].mxu0
        %888 = vmatprep.mubr.bf16.mxu0 0
        %889 = vmatmul.mubr.bf16.gmra.mrb[0].mxu0 %v389
        %v890 = vpop.f32.mrb[0].mxu0
        %v891 = vadd.f32 0.0, %v890
        %v892 = vpop.f32.mrb[0].mxu0
        %v893 = vpop.f32.mrb[0].mxu0
        %v894 = vadd.f32 0.0, %v893
        %v895 = vpop.f32.mrb[0].mxu0
        %896 = vmatprep.mubr.bf16.mxu0 0
        %897 = vmatmul.mubr.bf16.gmra.mrb[0].mxu0 %v392
        %v898 = vpop.f32.mrb[0].mxu0
        %v899 = vadd.f32 0.0, %v898
        %v900 = vpop.f32.mrb[0].mxu0
        %v901 = vpop.f32.mrb[0].mxu0
        %v902 = vadd.f32 0.0, %v901
        %v903 = vpop.f32.mrb[0].mxu0
        %904 = vmatprep.mubr.bf16.mxu0 0
        %905 = vmatmul.mubr.bf16.gmra.mrb[0].mxu0 %v747
        %v906 = vpop.f32.mrb[0].mxu0
        %v907 = vadd.f32 0.0, %v906
        %v908 = vpop.f32.mrb[0].mxu0
        %v909 = vpop.f32.mrb[0].mxu0
        %v910 = vadd.f32 0.0, %v909
        %v911 = vpop.f32.mrb[0].mxu0
        %912 = vdwg.mxu0
        %v913 = vadd.f32 %v610, %v787
        %v914 = vadd.f32 %v613, %v790
        %v915 = vadd.f32 %v618, %v795
        %v916 = vadd.f32 %v621, %v798
        %v917 = vadd.f32 %v626, %v803
        %v918 = vadd.f32 %v629, %v806
        %v919 = vadd.f32 %v634, %v811
        %v920 = vadd.f32 %v637, %v814
        %v921 = vadd.f32 %v642, %v819
        %v922 = vadd.f32 %v645, %v822
        %v923 = vadd.f32 %v650, %v827
        %v924 = vadd.f32 %v653, %v830
        %v925 = vadd.f32 %v658, %v835
        %v926 = vadd.f32 %v661, %v838
        %v927 = vadd.f32 %v666, %v843
        %v928 = vadd.f32 %v669, %v846
        %v929 = vadd.f32 %v674, %v851
        %v930 = vadd.f32 %v677, %v854
        %v931 = vadd.f32 %v682, %v859
        %v932 = vadd.f32 %v685, %v862
        %v933 = vadd.f32 %v690, %v867
        %v934 = vadd.f32 %v693, %v870
        %v935 = vadd.f32 %v698, %v875
        %v936 = vadd.f32 %v701, %v878
        %v937 = vadd.f32 %v706, %v883
        %v938 = vadd.f32 %v709, %v886
        %v939 = vadd.f32 %v714, %v891
        %v940 = vadd.f32 %v717, %v894
        %v941 = vadd.f32 %v722, %v899
        %v942 = vadd.f32 %v725, %v902
        %v943 = vadd.f32 %v730, %v907
        %v944 = vadd.f32 %v733, %v910
        %v946 = vlaneseq
        %v947 = vshrl.u32 %v946, 7
        %v948 = vsub.s32 0, %v947
        %v949 = vrot.slane %v215, %v948
        %v951 = vadd.f32 %v913, %v949
        %v952 = vadd.f32 %v914, %v949
        %v953 = vadd.f32 %v915, %v949
        %v954 = vadd.f32 %v916, %v949
        %v955 = vadd.f32 %v917, %v949
        %v956 = vadd.f32 %v918, %v949
        %v957 = vadd.f32 %v919, %v949
        %v958 = vadd.f32 %v920, %v949
        %v959 = vadd.f32 %v921, %v949
        %v960 = vadd.f32 %v922, %v949
        %v961 = vadd.f32 %v923, %v949
        %v962 = vadd.f32 %v924, %v949
        %v963 = vadd.f32 %v925, %v949
        %v964 = vadd.f32 %v926, %v949
        %v965 = vadd.f32 %v927, %v949
        %v966 = vadd.f32 %v928, %v949
        %v967 = vadd.f32 %v929, %v949
        %v968 = vadd.f32 %v930, %v949
        %v969 = vadd.f32 %v931, %v949
        %v970 = vadd.f32 %v932, %v949
        %v971 = vadd.f32 %v933, %v949
        %v972 = vadd.f32 %v934, %v949
        %v973 = vadd.f32 %v935, %v949
        %v974 = vadd.f32 %v936, %v949
        %v975 = vadd.f32 %v937, %v949
        %v976 = vadd.f32 %v938, %v949
        %v977 = vadd.f32 %v939, %v949
        %v978 = vadd.f32 %v940, %v949
        %v979 = vadd.f32 %v941, %v949
        %v980 = vadd.f32 %v942, %v949
        %v981 = vadd.f32 %v943, %v949
        %v982 = vadd.f32 %v944, %v949
        %v983 = vpack.c.bf16 %v952, %v951
        %v984 = vpack.c.bf16 %v954, %v953
        %v985 = vpack.c.bf16 %v956, %v955
        %v986 = vpack.c.bf16 %v958, %v957
        %v987 = vpack.c.bf16 %v960, %v959
        %v988 = vpack.c.bf16 %v962, %v961
        %v989 = vpack.c.bf16 %v964, %v963
        %v990 = vpack.c.bf16 %v966, %v965
        %v991 = vpack.c.bf16 %v968, %v967
        %v992 = vpack.c.bf16 %v970, %v969
        %v993 = vpack.c.bf16 %v972, %v971
        %v994 = vpack.c.bf16 %v974, %v973
        %v995 = vpack.c.bf16 %v976, %v975
        %v996 = vpack.c.bf16 %v978, %v977
        %v997 = vpack.c.bf16 %v980, %v979
        %v998 = vpack.c.bf16 %v982, %v981
        %v999 = vmax.bf16 %v983, 0
        %v1000 = vmax.bf16 %v984, 0
        %v1001 = vmax.bf16 %v985, 0
        %v1002 = vmax.bf16 %v986, 0
        %v1003 = vmax.bf16 %v987, 0
        %v1004 = vmax.bf16 %v988, 0
        %v1005 = vmax.bf16 %v989, 0
        %v1006 = vmax.bf16 %v990, 0
        %v1007 = vmax.bf16 %v991, 0
        %v1008 = vmax.bf16 %v992, 0
        %v1009 = vmax.bf16 %v993, 0
        %v1010 = vmax.bf16 %v994, 0
        %v1011 = vmax.bf16 %v995, 0
        %v1012 = vmax.bf16 %v996, 0
        %v1013 = vmax.bf16 %v997, 0
        %v1014 = vmax.bf16 %v998, 0
        %v1031 = vunpack.c.l.b16 %v999
        %v1032 = vunpack.c.h.b16 %v999
        %v1033 = vunpack.c.l.b16 %v1000
        %v1034 = vunpack.c.h.b16 %v1000
        %v1035 = vunpack.c.l.b16 %v1001
        %v1036 = vunpack.c.h.b16 %v1001
        %v1037 = vunpack.c.l.b16 %v1002
        %v1038 = vunpack.c.h.b16 %v1002
        %v1039 = vunpack.c.l.b16 %v1003
        %v1040 = vunpack.c.h.b16 %v1003
        %v1041 = vunpack.c.l.b16 %v1004
        %v1042 = vunpack.c.h.b16 %v1004
        %v1043 = vunpack.c.l.b16 %v1005
        %v1044 = vunpack.c.h.b16 %v1005
        %v1045 = vunpack.c.l.b16 %v1006
        %v1046 = vunpack.c.h.b16 %v1006
        %v1047 = vunpack.c.l.b16 %v1007
        %v1048 = vunpack.c.h.b16 %v1007
        %v1049 = vunpack.c.l.b16 %v1008
        %v1050 = vunpack.c.h.b16 %v1008
        %v1051 = vunpack.c.l.b16 %v1009
        %v1052 = vunpack.c.h.b16 %v1009
        %v1053 = vunpack.c.l.b16 %v1010
        %v1054 = vunpack.c.h.b16 %v1010
        %v1055 = vunpack.c.l.b16 %v1011
        %v1056 = vunpack.c.h.b16 %v1011
        %v1057 = vunpack.c.l.b16 %v1012
        %v1058 = vunpack.c.h.b16 %v1012
        %v1059 = vunpack.c.l.b16 %v1013
        %v1060 = vunpack.c.h.b16 %v1013
        %v1061 = vunpack.c.l.b16 %v1014
        %v1062 = vunpack.c.h.b16 %v1014
        %v1063 = vpack.c.b16 %v1031, %v1031
        %v1064 = vpack.c.b16 %v1032, %v1032
        %v1065 = vpack.c.b16 %v1033, %v1033
        %v1066 = vpack.c.b16 %v1034, %v1034
        %v1067 = vpack.c.b16 %v1035, %v1035
        %v1068 = vpack.c.b16 %v1036, %v1036
        %v1069 = vpack.c.b16 %v1037, %v1037
        %v1070 = vpack.c.b16 %v1038, %v1038
        %v1071 = vpack.c.b16 %v1039, %v1039
        %v1072 = vpack.c.b16 %v1040, %v1040
        %v1073 = vpack.c.b16 %v1041, %v1041
        %v1074 = vpack.c.b16 %v1042, %v1042
        %v1075 = vpack.c.b16 %v1043, %v1043
        %v1076 = vpack.c.b16 %v1044, %v1044
        %v1077 = vpack.c.b16 %v1045, %v1045
        %v1078 = vpack.c.b16 %v1046, %v1046
        %v1079 = vpack.c.b16 %v1047, %v1047
        %v1080 = vpack.c.b16 %v1048, %v1048
        %v1081 = vpack.c.b16 %v1049, %v1049
        %v1082 = vpack.c.b16 %v1050, %v1050
        %v1083 = vpack.c.b16 %v1051, %v1051
        %v1084 = vpack.c.b16 %v1052, %v1052
        %v1085 = vpack.c.b16 %v1053, %v1053
        %v1086 = vpack.c.b16 %v1054, %v1054
        %v1087 = vpack.c.b16 %v1055, %v1055
        %v1088 = vpack.c.b16 %v1056, %v1056
        %v1089 = vpack.c.b16 %v1057, %v1057
        %v1090 = vpack.c.b16 %v1058, %v1058
        %v1091 = vpack.c.b16 %v1059, %v1059
        %v1092 = vpack.c.b16 %v1060, %v1060
        %v1093 = vpack.c.b16 %v1061, %v1061
        %v1094 = vpack.c.b16 %v1062, %v1062
        %1127 = vst [vmem:[%s201] sm:$0xf] %v1063
        %1128 = vst [vmem:[%s201 + $0x4] sm:$0xf] %v1064
        %1129 = vst [vmem:[%s201 + $0x8] sm:$0xf] %v1065
        %1130 = vst [vmem:[%s201 + $0xc] sm:$0xf] %v1066
        %1131 = vst [vmem:[%s201 + $0x10] sm:$0xf] %v1067
        %1132 = vst [vmem:[%s201 + $0x14] sm:$0xf] %v1068
        %1133 = vst [vmem:[%s201 + $0x18] sm:$0xf] %v1069
        %1134 = vst [vmem:[%s201 + $0x1c] sm:$0xf] %v1070
        %1135 = vst [vmem:[%s201 + $0x20] sm:$0xf] %v1071
        %1136 = vst [vmem:[%s201 + $0x24] sm:$0xf] %v1072
        %1137 = vst [vmem:[%s201 + $0x28] sm:$0xf] %v1073
        %1138 = vst [vmem:[%s201 + $0x2c] sm:$0xf] %v1074
        %1139 = vst [vmem:[%s201 + $0x30] sm:$0xf] %v1075
        %1140 = vst [vmem:[%s201 + $0x34] sm:$0xf] %v1076
        %1141 = vst [vmem:[%s201 + $0x38] sm:$0xf] %v1077
        %1142 = vst [vmem:[%s201 + $0x3c] sm:$0xf] %v1078
        %1143 = vst [vmem:[%s201 + $0x40] sm:$0xf] %v1079
        %1144 = vst [vmem:[%s201 + $0x44] sm:$0xf] %v1080
        %1145 = vst [vmem:[%s201 + $0x48] sm:$0xf] %v1081
        %1146 = vst [vmem:[%s201 + $0x4c] sm:$0xf] %v1082
        %1147 = vst [vmem:[%s201 + $0x50] sm:$0xf] %v1083
        %1148 = vst [vmem:[%s201 + $0x54] sm:$0xf] %v1084
        %1149 = vst [vmem:[%s201 + $0x58] sm:$0xf] %v1085
        %1150 = vst [vmem:[%s201 + $0x5c] sm:$0xf] %v1086
        %1151 = vst [vmem:[%s201 + $0x60] sm:$0xf] %v1087
        %1152 = vst [vmem:[%s201 + $0x64] sm:$0xf] %v1088
        %1153 = vst [vmem:[%s201 + $0x68] sm:$0xf] %v1089
        %1154 = vst [vmem:[%s201 + $0x6c] sm:$0xf] %v1090
        %1155 = vst [vmem:[%s201 + $0x70] sm:$0xf] %v1091
        %1156 = vst [vmem:[%s201 + $0x74] sm:$0xf] %v1092
        %1157 = vst [vmem:[%s201 + $0x78] sm:$0xf] %v1093
        %1158 = vst [vmem:[%s201 + $0x7c] sm:$0xf] %v1094
        %s1159 = sand.u32 %s117, 1
        %s1160 = scalar_lea.sflag [#allocation3], %s1159
        %s1161 = sand.u32 %s117, 1
        %s1162 = smul.addr %s1161, 128
        %s1163 = scalar_lea.vmem [#allocation2], %s1162
        // Predicated region
        $region33: #{tpu_custom_call.1} parent=31 // pred_check
          %p1164 = pneg %p127
        $region34: #{tpu_custom_call.1} parent=31 // pred_check_branch
          %1166 = sbr.rel (%p1164) target = $region36
        $region35: #{tpu_custom_call.1} parent=31 // pred_region
          %s1168 = ssub.s32 2048, 2048
          %1169 = vsyncadd %s1160, %s1168
          %s1170 = smul.addr %s21, 32
          %s1171 = sadd.s32 %s22, %s1170
          %s1172 = smul.addr %s1171, 64
          %s1173 = scalar_lea.hbm %s3, %s1172
          %s1174 = sshll.u32 %s1163, 4
          %s1175 = int_to_ptr.vmem [resolvable:$true] %s1174
          %1180 = dma.vmem_to_hbm [thread:$0]  %s1175, 2048, %s1173, %s1160, 64, 64, 4
        $region36: #{tpu_custom_call.1} parent=31 // pred_fallthru
          _
      $region32: #{tpu_custom_call.1} parent=5 // pred_fallthru
        _
      %p1181 = scmp.le.s32.totalorder 2, %s12
      // Predicated region
      $region37: #{tpu_custom_call.1} parent=5 // pred_check
        %p1182 = pneg %p1181
      $region38: #{tpu_custom_call.1} parent=5 // pred_check_branch
        %1184 = sbr.rel (%p1182) target = $region40
      $region39: #{tpu_custom_call.1} parent=5 // pred_region
        %s1185 = ssub.s32 %s12, 2
        // Predicated region
        $region41: #{tpu_custom_call.1} parent=39 // pred_check
          %p1186 = pneg %p133
        $region42: #{tpu_custom_call.1} parent=39 // pred_check_branch
          %1188 = sbr.rel (%p1186) target = $region44
        $region43: #{tpu_custom_call.1} parent=39 // pred_region
          %s1189 = sand.u32 %s118, 1
          %s1190 = scalar_lea.sflag [#allocation3], %s1189
          %s1191 = sand.u32 %s118, 1
          %s1192 = smul.addr %s1191, 128
          %s1193 = scalar_lea.vmem [#allocation2], %s1192
          %1194 = dma.done %s1190, 2048
        $region44: #{tpu_custom_call.1} parent=39 // pred_fallthru
          _
      $region40: #{tpu_custom_call.1} parent=5 // pred_fallthru
        _
    $region6: #{tpu_custom_call.1} parent=1 // loop_footer
      %s16 = sadd.s32 1, %s12
    $region7: #{tpu_custom_call.1} parent=1 // loop_footer_branch
      %11 = sbr.rel target = $region3
    $region8: #{tpu_custom_call.1} parent=1 // loop_exit
      _
    %1195 = vsyncpa [#allocation3], 1
    %s1196 = scalar_lea.sflag [#allocation3], 1
    %1197 = vsyncpa %s1196, 1

</llo_original>
